<compile_context>
chip_gen: v5e
topology: v5e:2x2
jax: 0.10.0
libtpu: 0.0.40
codegen_flags: <defaults>
</compile_context>

<pallas_src>
import functools

import jax
import jax.numpy as jnp
from jax.experimental import pallas as pl
from jax.experimental.pallas import tpu as pltpu


def _round_up(a, m):
    return (a + m - 1) // m * m


def _softmax_last(z):
    """Numerically-stable softmax over the last axis (PyTorch dim=1 here)."""
    m = jnp.max(z, axis=-1, keepdims=True)
    e = jnp.exp(z - m)
    return e * pl.reciprocal(jnp.sum(e, axis=-1, keepdims=True), approx=True)


def hier_mlp_kernel(
    x_ref,
    w1_ref, b1_ref,
    w2_ref, b2_ref,
    wcls_ref, bcls_ref,
    wl2p_ref, wl3p_ref,
    out_ref,
    *, c1, c2, c3,
):
    # fc1 + ReLU (bf16 operands, f32 accumulation on the MXU).
    h = jnp.dot(x_ref[...].astype(jnp.bfloat16), w1_ref[...],
                preferred_element_type=jnp.float32) + b1_ref[...]
    h = jnp.maximum(h, 0.0)

    # TODO(synk): nn.Dropout(0.5) implemented as identity (eval / inference
    # mode); training-mode Bernoulli masking is not applied.

    # fc2 + ReLU
    h = jnp.dot(h.astype(jnp.bfloat16), w2_ref[...],
                preferred_element_type=jnp.float32) + b2_ref[...]
    h = jnp.maximum(h, 0.0)

    # Fused h-side classifier matmul: one lane-dense (tb, 128) slab holding
    # [l1 | l2_x_part | l3_x_part | 0-pad]; per-level biases already placed
    # on their columns of bcls.
    slab = jnp.dot(h.astype(jnp.bfloat16), wcls_ref[...],
                   preferred_element_type=jnp.float32) + bcls_ref[...]

    # level2: add p1 @ Wp. wl2p is pre-padded to (c1, 128) with its nonzero
    # columns exactly on the l2 lanes, so the add only touches l2 columns.
    p1 = _softmax_last(slab[:, :c1])
    slab = slab + jnp.dot(p1, wl2p_ref[...], preferred_element_type=jnp.float32)

    # level3: add p2 @ Wp (nonzero columns exactly on the l3 lanes).
    p2 = _softmax_last(slab[:, c1:c1 + c2])
    slab = slab + jnp.dot(p2, wl3p_ref[...], preferred_element_type=jnp.float32)

    # Single unmasked, lane-dense 128-wide output store.
    out_ref[...] = slab.astype(out_ref.dtype)


def hierarchical_mlp_forward(x, kp, *, batch_tile=None):
    """x: (B, input_dim) f32. kp: output of prepare_kernel_params."""
    c1, c2, c3 = kp["dims"]
    B, Din = x.shape
    Dpad, _H = kp["w1"].shape
    CPAD = kp["wcls"].shape[1]

    # Batch tile: large enough to amortize per-step overhead, multiple steps
    # so DMA pipelines against compute (and v7x megacore gets parallel work).
    tb = batch_tile if batch_tile is not None else min(256, _round_up(B, 8))
    Bpad = _round_up(B, tb)

    # Zero-pad features 300 -> 384 and batch to a tile multiple.
    xp = jnp.zeros((Bpad, Dpad), jnp.float32).at[:B, :Din].set(x)

    grid = (Bpad // tb,)

    def tile_map(i):
        return (i, 0)

    def rep_map(i):
        return (0, 0)

    full = lambda a: pl.BlockSpec(a.shape, rep_map)

    in_specs = [
        pl.BlockSpec((tb, Dpad), tile_map),
        full(kp["w1"]), full(kp["b1"]),
        full(kp["w2"]), full(kp["b2"]),
        full(kp["wcls"]), full(kp["bcls"]),
        full(kp["wl2p"]), full(kp["wl3p"]),
    ]
    out_spec = pl.BlockSpec((tb, CPAD), tile_map)

    out = pl.pallas_call(
        functools.partial(hier_mlp_kernel, c1=c1, c2=c2, c3=c3),
        out_shape=jax.ShapeDtypeStruct((Bpad, CPAD), jnp.float32),
        grid_spec=pltpu.PrefetchScalarGridSpec(
            num_scalar_prefetch=0,
            grid=grid,
            in_specs=in_specs,
            out_specs=out_spec,
        ),
        compiler_params=pltpu.CompilerParams(
            dimension_semantics=("parallel",),
        ),
    )(
        xp,
        kp["w1"], kp["b1"],
        kp["w2"], kp["b2"],
        kp["wcls"], kp["bcls"],
        kp["wl2p"], kp["wl3p"],
    )

    l1 = out[:B, :c1]
    l2 = out[:B, c1:c1 + c2]
    l3 = out[:B, c1 + c2:c1 + c2 + c3]
    return l1, l2, l3


# ----------------------------------------------------------------------------
# Parameter construction / preparation
# ----------------------------------------------------------------------------

def _linear_init(key, fan_in, fan_out):
    """Deterministic PyTorch-style Linear init (uniform +-1/sqrt(fan_in))."""
    kw, kb = jax.random.split(key)
    bound = 1.0 / (fan_in ** 0.5)
    w = jax.random.uniform(kw, (fan_in, fan_out), jnp.float32, -bound, bound)
    b = jax.random.uniform(kb, (1, fan_out), jnp.float32, -bound, bound)
    return w, b


def make_params(key, input_dim, hidden_dim, c1, c2, c3):
    """Master f32 parameters in 'math' layout (used by the reference)."""
    ks = jax.random.split(key, 5)
    w1, b1 = _linear_init(ks[0], input_dim, hidden_dim)
    w2, b2 = _linear_init(ks[1], hidden_dim, hidden_dim)
    wl1, bl1 = _linear_init(ks[2], hidden_dim, c1)
    wl2, bl2 = _linear_init(ks[3], hidden_dim + c1, c2)   # acts on cat([h, p1])
    wl3, bl3 = _linear_init(ks[4], hidden_dim + c2, c3)   # acts on cat([h, p2])
    return dict(w1=w1, b1=b1, w2=w2, b2=b2,
                wl1=wl1, bl1=bl1, wl2=wl2, bl2=bl2, wl3=wl3, bl3=bl3)


def prepare_kernel_params(p, input_dim, hidden_dim, c1, c2, c3):
    """Pad / fuse / cast the master params into the kernel layout."""
    Dpad = _round_up(input_dim, 128)
    ctot = c1 + c2 + c3
    CPAD = _round_up(max(ctot, 128), 128)

    # fc1 weight padded on the input dim (zero rows contribute nothing).
    w1p = jnp.zeros((Dpad, hidden_dim), jnp.float32).at[:input_dim].set(p["w1"])

    # Split the level2/level3 weights into x-part and probs-part.
    wl2x, wl2p = p["wl2"][:hidden_dim], p["wl2"][hidden_dim:]
    wl3x, wl3p = p["wl3"][:hidden_dim], p["wl3"][hidden_dim:]

    # Fused h-side classifier weight and bias, lane-padded to CPAD.
    wcls = (jnp.zeros((hidden_dim, CPAD), jnp.float32)
            .at[:, :c1].set(p["wl1"])
            .at[:, c1:c1 + c2].set(wl2x)
            .at[:, c1 + c2:ctot].set(wl3x))
    bcls = (jnp.zeros((1, CPAD), jnp.float32)
            .at[:, :c1].set(p["bl1"])
            .at[:, c1:c1 + c2].set(p["bl2"])
            .at[:, c1 + c2:ctot].set(p["bl3"]))

    # Probs-part weights padded so their output columns land on l2 / l3 lanes.
    wl2p_pad = jnp.zeros((c1, CPAD), jnp.float32).at[:, c1:c1 + c2].set(wl2p)
    wl3p_pad = jnp.zeros((c2, CPAD), jnp.float32).at[:, c1 + c2:ctot].set(wl3p)

    return dict(
        dims=(c1, c2, c3),
        w1=w1p.astype(jnp.bfloat16), b1=p["b1"],
        w2=p["w2"].astype(jnp.bfloat16), b2=p["b2"],
        wcls=wcls.astype(jnp.bfloat16), bcls=bcls,
        wl2p=wl2p_pad, wl3p=wl3p_pad,
    )


def reference_forward(x, p):
    """Pure-JAX f32 reference matching the PyTorch forward (eval mode)."""
    h = jax.nn.relu(x @ p["w1"] + p["b1"])
    h = jax.nn.relu(h @ p["w2"] + p["b2"])
    l1 = h @ p["wl1"] + p["bl1"]
    p1 = jax.nn.softmax(l1, axis=1)
    l2 = jnp.concatenate([h, p1], axis=1) @ p["wl2"] + p["bl2"]
    p2 = jax.nn.softmax(l2, axis=1)
    l3 = jnp.concatenate([h, p2], axis=1) @ p["wl3"] + p["bl3"]
    return l1, l2, l3


if __name__ == "__main__":
    # Shapes consistent with the original script (input_dim=300, hidden_dim=256),
    # small class counts; batch chosen so the grid has 2 parallel steps.
    batch = 128
    input_dim = 300
    hidden_dim = 256
    num_l1, num_l2, num_l3 = 4, 8, 12

    key = jax.random.PRNGKey(0)
    k_x, k_p = jax.random.split(key)
    x = jax.random.normal(k_x, (batch, input_dim), jnp.float32)

    params = make_params(k_p, input_dim, hidden_dim, num_l1, num_l2, num_l3)
    kparams = prepare_kernel_params(params, input_dim, hidden_dim,
                                    num_l1, num_l2, num_l3)

    l1, l2, l3 = hierarchical_mlp_forward(x, kparams, batch_tile=64)
    jax.block_until_ready((l1, l2, l3))

    r1, r2, r3 = reference_forward(x, params)
    # bf16 matmul operands (f32 accumulation) -> relax tolerances vs f32 ref.
    assert jnp.allclose(l1, r1, atol=5e-2, rtol=5e-2), float(jnp.max(jnp.abs(l1 - r1)))
    assert jnp.allclose(l2, r2, atol=5e-2, rtol=5e-2), float(jnp.max(jnp.abs(l2 - r2)))
    assert jnp.allclose(l3, r3, atol=5e-2, rtol=5e-2), float(jnp.max(jnp.abs(l3 - r3)))

    print("KERNEL_OK")
</pallas_src>

<mosaic_0001>
module attributes {stable_mosaic.version = 11 : i64} {
  func.func @hier_mlp_kernel(%arg0: i32, %arg1: memref<64x384xf32, #tpu.memory_space<vmem>>, %arg2: memref<384x256xbf16, #tpu.memory_space<vmem>>, %arg3: memref<1x256xf32, #tpu.memory_space<vmem>>, %arg4: memref<256x256xbf16, #tpu.memory_space<vmem>>, %arg5: memref<1x256xf32, #tpu.memory_space<vmem>>, %arg6: memref<256x128xbf16, #tpu.memory_space<vmem>>, %arg7: memref<1x128xf32, #tpu.memory_space<vmem>>, %arg8: memref<4x128xf32, #tpu.memory_space<vmem>>, %arg9: memref<8x128xf32, #tpu.memory_space<vmem>>, %arg10: memref<64x128xf32, #tpu.memory_space<vmem>>) attributes {dimension_semantics = [#tpu.dimension_semantics<parallel>], iteration_bounds = array<i64: 2>, scalar_prefetch = 0 : i64, scratch_operands = 0 : i64, tpu.core_type = #tpu.core_type<tc>, window_params = [{transform_indices = @transform_0, window_bounds = array<i64: 64, 384>}, {pipeline_mode = #tpu.pipeline_mode<synchronous>, transform_indices = @transform_1, window_bounds = array<i64: 384, 256>}, {pipeline_mode = #tpu.pipeline_mode<synchronous>, transform_indices = @transform_2, window_bounds = array<i64: 1, 256>}, {pipeline_mode = #tpu.pipeline_mode<synchronous>, transform_indices = @transform_3, window_bounds = array<i64: 256, 256>}, {pipeline_mode = #tpu.pipeline_mode<synchronous>, transform_indices = @transform_4, window_bounds = array<i64: 1, 256>}, {pipeline_mode = #tpu.pipeline_mode<synchronous>, transform_indices = @transform_5, window_bounds = array<i64: 256, 128>}, {pipeline_mode = #tpu.pipeline_mode<synchronous>, transform_indices = @transform_6, window_bounds = array<i64: 1, 128>}, {pipeline_mode = #tpu.pipeline_mode<synchronous>, transform_indices = @transform_7, window_bounds = array<i64: 4, 128>}, {pipeline_mode = #tpu.pipeline_mode<synchronous>, transform_indices = @transform_8, window_bounds = array<i64: 8, 128>}, {transform_indices = @transform_9, window_bounds = array<i64: 64, 128>}]} {
    %c0 = arith.constant 0 : index
    %c0_0 = arith.constant 0 : index
    %0 = vector.load %arg1[%c0, %c0_0] : memref<64x384xf32, #tpu.memory_space<vmem>>, vector<64x384xf32>
    %1 = arith.truncf %0 : vector<64x384xf32> to vector<64x384xbf16>
    %c0_1 = arith.constant 0 : index
    %c0_2 = arith.constant 0 : index
    %2 = vector.load %arg2[%c0_1, %c0_2] : memref<384x256xbf16, #tpu.memory_space<vmem>>, vector<384x256xbf16>
    %cst = arith.constant dense<0.000000e+00> : vector<64x256xf32>
    %3 = tpu.matmul %1, %2, %cst {dimension_numbers = #tpu.dot_dimension_numbers<[1], [0], [0], [1], [0, 0, 1, 1], [], []>} : vector<64x384xbf16>, vector<384x256xbf16>, vector<64x256xf32> -> vector<64x256xf32>
    %c0_3 = arith.constant 0 : index
    %c0_4 = arith.constant 0 : index
    %4 = vector.load %arg3[%c0_3, %c0_4] : memref<1x256xf32, #tpu.memory_space<vmem>>, vector<1x256xf32>
    %5 = vector.broadcast %4 : vector<1x256xf32> to vector<64x256xf32>
    %6 = arith.addf %3, %5 : vector<64x256xf32>
    %cst_5 = arith.constant 0.000000e+00 : f32
    %7 = vector.broadcast %cst_5 : f32 to vector<64x256xf32>
    %8 = arith.maximumf %6, %7 : vector<64x256xf32>
    %9 = arith.truncf %8 : vector<64x256xf32> to vector<64x256xbf16>
    %c0_6 = arith.constant 0 : index
    %c0_7 = arith.constant 0 : index
    %10 = vector.load %arg4[%c0_6, %c0_7] : memref<256x256xbf16, #tpu.memory_space<vmem>>, vector<256x256xbf16>
    %cst_8 = arith.constant dense<0.000000e+00> : vector<64x256xf32>
    %11 = tpu.matmul %9, %10, %cst_8 {dimension_numbers = #tpu.dot_dimension_numbers<[1], [0], [0], [1], [0, 0, 1, 1], [], []>} : vector<64x256xbf16>, vector<256x256xbf16>, vector<64x256xf32> -> vector<64x256xf32>
    %c0_9 = arith.constant 0 : index
    %c0_10 = arith.constant 0 : index
    %12 = vector.load %arg5[%c0_9, %c0_10] : memref<1x256xf32, #tpu.memory_space<vmem>>, vector<1x256xf32>
    %13 = vector.broadcast %12 : vector<1x256xf32> to vector<64x256xf32>
    %14 = arith.addf %11, %13 : vector<64x256xf32>
    %cst_11 = arith.constant 0.000000e+00 : f32
    %15 = vector.broadcast %cst_11 : f32 to vector<64x256xf32>
    %16 = arith.maximumf %14, %15 : vector<64x256xf32>
    %17 = arith.truncf %16 : vector<64x256xf32> to vector<64x256xbf16>
    %c0_12 = arith.constant 0 : index
    %c0_13 = arith.constant 0 : index
    %18 = vector.load %arg6[%c0_12, %c0_13] : memref<256x128xbf16, #tpu.memory_space<vmem>>, vector<256x128xbf16>
    %cst_14 = arith.constant dense<0.000000e+00> : vector<64x128xf32>
    %19 = tpu.matmul %17, %18, %cst_14 {dimension_numbers = #tpu.dot_dimension_numbers<[1], [0], [0], [1], [0, 0, 1, 1], [], []>} : vector<64x256xbf16>, vector<256x128xbf16>, vector<64x128xf32> -> vector<64x128xf32>
    %c0_15 = arith.constant 0 : index
    %c0_16 = arith.constant 0 : index
    %20 = vector.load %arg7[%c0_15, %c0_16] : memref<1x128xf32, #tpu.memory_space<vmem>>, vector<1x128xf32>
    %21 = vector.broadcast %20 : vector<1x128xf32> to vector<64x128xf32>
    %22 = arith.addf %19, %21 : vector<64x128xf32>
    %23 = vector.extract_strided_slice %22 {offsets = [0, 0], sizes = [64, 4], strides = [1, 1]} : vector<64x128xf32> to vector<64x4xf32>
    %cst_17 = arith.constant dense<0xFF800000> : vector<64xf32>
    %24 = vector.multi_reduction <maximumf>, %23, %cst_17 [1] : vector<64x4xf32> to vector<64xf32>
    %25 = vector.shape_cast %24 : vector<64xf32> to vector<64x1xf32>
    %26 = vector.broadcast %25 : vector<64x1xf32> to vector<64x4xf32>
    %27 = arith.subf %23, %26 : vector<64x4xf32>
    %28 = math.exp %27 : vector<64x4xf32>
    %cst_18 = arith.constant dense<0.000000e+00> : vector<64xf32>
    %29 = vector.multi_reduction <add>, %28, %cst_18 [1] : vector<64x4xf32> to vector<64xf32>
    %30 = vector.shape_cast %29 : vector<64xf32> to vector<64x1xf32>
    %31 = tpu.reciprocal %30 {approx = true} : vector<64x1xf32> -> vector<64x1xf32>
    %32 = vector.broadcast %31 : vector<64x1xf32> to vector<64x4xf32>
    %33 = arith.mulf %28, %32 : vector<64x4xf32>
    %c0_19 = arith.constant 0 : index
    %c0_20 = arith.constant 0 : index
    %34 = vector.load %arg8[%c0_19, %c0_20] : memref<4x128xf32, #tpu.memory_space<vmem>>, vector<4x128xf32>
    %cst_21 = arith.constant dense<0.000000e+00> : vector<64x128xf32>
    %35 = tpu.matmul %33, %34, %cst_21 {dimension_numbers = #tpu.dot_dimension_numbers<[1], [0], [0], [1], [0, 0, 1, 1], [], []>} : vector<64x4xf32>, vector<4x128xf32>, vector<64x128xf32> -> vector<64x128xf32>
    %36 = arith.addf %22, %35 : vector<64x128xf32>
    %37 = vector.extract_strided_slice %36 {offsets = [0, 4], sizes = [64, 8], strides = [1, 1]} : vector<64x128xf32> to vector<64x8xf32>
    %cst_22 = arith.constant dense<0xFF800000> : vector<64xf32>
    %38 = vector.multi_reduction <maximumf>, %37, %cst_22 [1] : vector<64x8xf32> to vector<64xf32>
    %39 = vector.shape_cast %38 : vector<64xf32> to vector<64x1xf32>
    %40 = vector.broadcast %39 : vector<64x1xf32> to vector<64x8xf32>
    %41 = arith.subf %37, %40 : vector<64x8xf32>
    %42 = math.exp %41 : vector<64x8xf32>
    %cst_23 = arith.constant dense<0.000000e+00> : vector<64xf32>
    %43 = vector.multi_reduction <add>, %42, %cst_23 [1] : vector<64x8xf32> to vector<64xf32>
    %44 = vector.shape_cast %43 : vector<64xf32> to vector<64x1xf32>
    %45 = tpu.reciprocal %44 {approx = true} : vector<64x1xf32> -> vector<64x1xf32>
    %46 = vector.broadcast %45 : vector<64x1xf32> to vector<64x8xf32>
    %47 = arith.mulf %42, %46 : vector<64x8xf32>
    %c0_24 = arith.constant 0 : index
    %c0_25 = arith.constant 0 : index
    %48 = vector.load %arg9[%c0_24, %c0_25] : memref<8x128xf32, #tpu.memory_space<vmem>>, vector<8x128xf32>
    %cst_26 = arith.constant dense<0.000000e+00> : vector<64x128xf32>
    %49 = tpu.matmul %47, %48, %cst_26 {dimension_numbers = #tpu.dot_dimension_numbers<[1], [0], [0], [1], [0, 0, 1, 1], [], []>} : vector<64x8xf32>, vector<8x128xf32>, vector<64x128xf32> -> vector<64x128xf32>
    %50 = arith.addf %36, %49 : vector<64x128xf32>
    %c0_27 = arith.constant 0 : index
    %c0_28 = arith.constant 0 : index
    %51 = vector.load %arg10[%c0_27, %c0_28] : memref<64x128xf32, #tpu.memory_space<vmem>>, vector<64x128xf32>
    tpu.vector_store %arg10[%c0_27, %c0_28], %50 {strides = array<i32>} : memref<64x128xf32, #tpu.memory_space<vmem>>, vector<64x128xf32>,
    return
  }
  func.func @transform_0(%arg0: i32) -> (i32, i32) {
    %c0_i32 = arith.constant 0 : i32
    %c0_i32_0 = arith.constant 0 : i32
    return %arg0, %c0_i32 : i32, i32
  }
  func.func @transform_1(%arg0: i32) -> (i32, i32) {
    %c0_i32 = arith.constant 0 : i32
    %c0_i32_0 = arith.constant 0 : i32
    %c0_i32_1 = arith.constant 0 : i32
    return %c0_i32, %c0_i32_0 : i32, i32
  }
  func.func @transform_2(%arg0: i32) -> (i32, i32) {
    %c0_i32 = arith.constant 0 : i32
    %c0_i32_0 = arith.constant 0 : i32
    %c0_i32_1 = arith.constant 0 : i32
    return %c0_i32, %c0_i32_0 : i32, i32
  }
  func.func @transform_3(%arg0: i32) -> (i32, i32) {
    %c0_i32 = arith.constant 0 : i32
    %c0_i32_0 = arith.constant 0 : i32
    %c0_i32_1 = arith.constant 0 : i32
    return %c0_i32, %c0_i32_0 : i32, i32
  }
  func.func @transform_4(%arg0: i32) -> (i32, i32) {
    %c0_i32 = arith.constant 0 : i32
    %c0_i32_0 = arith.constant 0 : i32
    %c0_i32_1 = arith.constant 0 : i32
    return %c0_i32, %c0_i32_0 : i32, i32
  }
  func.func @transform_5(%arg0: i32) -> (i32, i32) {
    %c0_i32 = arith.constant 0 : i32
    %c0_i32_0 = arith.constant 0 : i32
    %c0_i32_1 = arith.constant 0 : i32
    return %c0_i32, %c0_i32_0 : i32, i32
  }
  func.func @transform_6(%arg0: i32) -> (i32, i32) {
    %c0_i32 = arith.constant 0 : i32
    %c0_i32_0 = arith.constant 0 : i32
    %c0_i32_1 = arith.constant 0 : i32
    return %c0_i32, %c0_i32_0 : i32, i32
  }
  func.func @transform_7(%arg0: i32) -> (i32, i32) {
    %c0_i32 = arith.constant 0 : i32
    %c0_i32_0 = arith.constant 0 : i32
    %c0_i32_1 = arith.constant 0 : i32
    return %c0_i32, %c0_i32_0 : i32, i32
  }
  func.func @transform_8(%arg0: i32) -> (i32, i32) {
    %c0_i32 = arith.constant 0 : i32
    %c0_i32_0 = arith.constant 0 : i32
    %c0_i32_1 = arith.constant 0 : i32
    return %c0_i32, %c0_i32_0 : i32, i32
  }
  func.func @transform_9(%arg0: i32) -> (i32, i32) {
    %c0_i32 = arith.constant 0 : i32
    %c0_i32_0 = arith.constant 0 : i32
    return %arg0, %c0_i32 : i32, i32
  }
}

</mosaic_0001>

<llo_original>
// kernel: tpu_custom_call.1
$region0: #{tpu_custom_call.1}
  #allocation0 [shape = 'u32[]', space=smem, size = 0x4, offset = 0x4, fixed_abs, tag = 'smem constant byte address 0x4 - core index']
  #allocation1 [shape = 'u32[72,128]{1,0:T(1,128)}', space=vmem, size = 0x9000, scoped, tag = 'internal scratch']
  %s0 = inlined_call_operand.hbm [shape: f32[128,384], index: 0, kind: input, shape index: {}]
  %s1 = inlined_call_operand.hbm [shape: bf16[384,256], index: 1, kind: input, shape index: {}]
  %s2 = inlined_call_operand.hbm [shape: f32[1,256], index: 2, kind: input, shape index: {}]
  %s3 = inlined_call_operand.hbm [shape: bf16[256,256], index: 3, kind: input, shape index: {}]
  %s4 = inlined_call_operand.vmem [shape: f32[1,256], index: 4, kind: input, shape index: {}]
  %s5 = inlined_call_operand.hbm [shape: bf16[256,128], index: 5, kind: input, shape index: {}]
  %s6 = inlined_call_operand.hbm [shape: f32[1,128], index: 6, kind: input, shape index: {}]
  %s7 = inlined_call_operand.vmem [shape: f32[4,128], index: 7, kind: input, shape index: {}]
  %s8 = inlined_call_operand.hbm [shape: f32[8,128], index: 8, kind: input, shape index: {}]
  %s9 = inlined_call_operand.hbm [shape: f32[128,128], index: 9, kind: output, shape index: {}]
  %s10 = sld [smem:[#allocation0]]
  $region97: #{tpu_custom_call.1} parent=0
    _
  %s12 = ssub.s32 1, %s10
  %s13 = scalar_select 0, %s12, %s10
  $region1: #{tpu_custom_call.1} parent=0
    #allocation2 [shape = 'u8[196608]{0}', space=vmem, size = 0x30000, scoped, tag = 'input window, operand 0']
    #allocation3 [shape = 's32[2]{0}', space=sflag, size = 0x8, scoped, tag = 'scoped memory for tpu_custom_call.1']
    #allocation4 [shape = 's32[2]{0}', space=sflag, size = 0x8, scoped, tag = 'scoped memory for tpu_custom_call.1']
    #allocation5 [shape = 'u8[196608]{0}', space=vmem, size = 0x30000, scoped, tag = 'input window, operand 1, single buffered']
    #allocation6 [shape = 's32[1]{0}', space=sflag, size = 0x4, scoped, tag = 'scoped memory for tpu_custom_call.1']
    #allocation7 [shape = 'u8[1024]{0}', space=vmem, size = 0x400, scoped, tag = 'input window, operand 2, single buffered']
    #allocation8 [shape = 'u8[131072]{0}', space=vmem, size = 0x20000, scoped, tag = 'input window, operand 3, single buffered']
    #allocation9 [shape = 's32[1]{0}', space=sflag, size = 0x4, scoped, tag = 'scoped memory for tpu_custom_call.1']
    #allocation10 [shape = 'u8[65536]{0}', space=vmem, size = 0x10000, scoped, tag = 'input window, operand 5, single buffered']
    #allocation11 [shape = 'u8[512]{0}', space=vmem, size = 0x400, scoped, tag = 'input window, operand 6, single buffered']
    #allocation12 [shape = 's32[1]{0}', space=sflag, size = 0x4, scoped, tag = 'scoped memory for tpu_custom_call.1']
    #allocation13 [shape = 'u8[4096]{0}', space=vmem, size = 0x1000, scoped, tag = 'input window, operand 8, single buffered']
    #allocation14 [shape = 'u8[65536]{0}', space=vmem, size = 0x10000, scoped, tag = 'output window, operand 0']
    %14 = vsyncpa [#allocation3], 0
    %s15 = scalar_lea.sflag [#allocation3], 1
    %16 = vsyncpa %s15, 0
    %17 = vsyncpa [#allocation6], 0
    %18 = vsyncpa [#allocation9], 0
    %19 = vsyncpa [#allocation12], 0
    %20 = vsyncpa [#allocation4], 0
    %s21 = scalar_lea.sflag [#allocation4], 1
    %22 = vsyncpa %s21, 0
    loop: start=0, step=1, limit=4
    $region2: #{tpu_custom_call.1} parent=1 // loop_pre_header
      _
    $region3: #{tpu_custom_call.1} parent=1 // loop_header
      %s24 = sphi 0, %s28
      %p25 = scmp.ge.s32.totalorder %s24, 4
      %s34 = sphi 0, %s36
      %s37 = sphi 0, %s34
      %s38 = sphi 0, %s37
      %s54 = sphi 0, %s38
      %s58 = sphi 0, %s58
      %s60 = sphi 0, %s58
      %s61 = sphi 0, %s60
      %s75 = sphi 0, %s61
      %s79 = sphi 0, %s79
      %s81 = sphi 0, %s79
      %s82 = sphi 0, %s81
      %s96 = sphi 0, %s82
      %s100 = sphi 0, %s100
      %s102 = sphi 0, %s100
      %s103 = sphi 0, %s102
      %s117 = sphi 0, %s103
      %s121 = sphi 0, %s121
      %s123 = sphi 0, %s121
      %s124 = sphi 0, %s123
      %s138 = sphi 0, %s124
      %s142 = sphi 0, %s142
      %s144 = sphi 0, %s142
      %s145 = sphi 0, %s144
      %s159 = sphi 0, %s145
      %s163 = sphi 0, %s163
      %s165 = sphi 0, %s163
      %s166 = sphi 0, %s165
      %s180 = sphi 0, %s166
      %s184 = sphi 0, %s184
      %s186 = sphi 0, %s184
      %s187 = sphi 0, %s186
      %s201 = sphi 0, %s187
      %s205 = sphi 0, %s205
      %s207 = sphi 0, %s205
      %s208 = sphi 0, %s207
      %s222 = sphi 0, %s208
      %s228 = sphi 0, %s230
      %s231 = sphi 0, %s228
      %s232 = sphi 0, %s231
      %s248 = sphi 0, %s232
    $region4: #{tpu_custom_call.1} parent=1 // loop_header_branch
      %27 = sbr.rel (%p25) target = $region8
    $region5: #{tpu_custom_call.1} parent=1 // loop_body
      %s29 = ssub.s32 %s24, 1
      %s30 = ssub.s32 %s24, 2
      %s31 = sadd.s32 %s24, 1
      %s32 = ssub.s32 %s24, %s31
      %p33 = scmp.eq.s32.totalorder %s32, 0
      %s35 = sadd.s32 %s34, 1
      %s36 = scalar_select %p33, %s34, %s35
      %p39 = pneg %p33
      %p40 = scmp.eq.s32.totalorder %s24, 1
      %p41 = por %p39, %p40
      %p42 = scmp.ne.s32.totalorder %s34, %s37
      %p43 = scmp.eq.s32.totalorder %s24, 0
      %p44 = por %p42, %p43
      %p45 = scmp.ne.s32.totalorder %s34, %s37
      %p46 = scmp.eq.s32.totalorder %s29, 1
      %p47 = por %p45, %p46
      %p48 = scmp.ne.s32.totalorder %s37, %s38
      %p49 = scmp.eq.s32.totalorder %s29, 0
      %p50 = por %p48, %p49
      %p51 = scmp.ne.s32.totalorder %s37, %s38
      %p52 = scmp.eq.s32.totalorder %s30, 1
      %p53 = por %p51, %p52
      %p55 = scmp.ne.s32.totalorder %s38, %s54
      %p56 = scmp.eq.s32.totalorder %s30, 0
      %p57 = por %p55, %p56
      %s59 = sadd.s32 %s58, 1
      %p62 = scmp.eq.s32.totalorder %s24, 1
      %p63 = scmp.ne.s32.totalorder %s58, %s60
      %p64 = scmp.eq.s32.totalorder %s24, 0
      %p65 = por %p63, %p64
      %p66 = scmp.ne.s32.totalorder %s58, %s60
      %p67 = scmp.eq.s32.totalorder %s29, 1
      %p68 = por %p66, %p67
      %p69 = scmp.ne.s32.totalorder %s60, %s61
      %p70 = scmp.eq.s32.totalorder %s29, 0
      %p71 = por %p69, %p70
      %p72 = scmp.ne.s32.totalorder %s60, %s61
      %p73 = scmp.eq.s32.totalorder %s30, 1
      %p74 = por %p72, %p73
      %p76 = scmp.ne.s32.totalorder %s61, %s75
      %p77 = scmp.eq.s32.totalorder %s30, 0
      %p78 = por %p76, %p77
      %s80 = sadd.s32 %s79, 1
      %p83 = scmp.eq.s32.totalorder %s24, 1
      %p84 = scmp.ne.s32.totalorder %s79, %s81
      %p85 = scmp.eq.s32.totalorder %s24, 0
      %p86 = por %p84, %p85
      %p87 = scmp.ne.s32.totalorder %s79, %s81
      %p88 = scmp.eq.s32.totalorder %s29, 1
      %p89 = por %p87, %p88
      %p90 = scmp.ne.s32.totalorder %s81, %s82
      %p91 = scmp.eq.s32.totalorder %s29, 0
      %p92 = por %p90, %p91
      %p93 = scmp.ne.s32.totalorder %s81, %s82
      %p94 = scmp.eq.s32.totalorder %s30, 1
      %p95 = por %p93, %p94
      %p97 = scmp.ne.s32.totalorder %s82, %s96
      %p98 = scmp.eq.s32.totalorder %s30, 0
      %p99 = por %p97, %p98
      %s101 = sadd.s32 %s100, 1
      %p104 = scmp.eq.s32.totalorder %s24, 1
      %p105 = scmp.ne.s32.totalorder %s100, %s102
      %p106 = scmp.eq.s32.totalorder %s24, 0
      %p107 = por %p105, %p106
      %p108 = scmp.ne.s32.totalorder %s100, %s102
      %p109 = scmp.eq.s32.totalorder %s29, 1
      %p110 = por %p108, %p109
      %p111 = scmp.ne.s32.totalorder %s102, %s103
      %p112 = scmp.eq.s32.totalorder %s29, 0
      %p113 = por %p111, %p112
      %p114 = scmp.ne.s32.totalorder %s102, %s103
      %p115 = scmp.eq.s32.totalorder %s30, 1
      %p116 = por %p114, %p115
      %p118 = scmp.ne.s32.totalorder %s103, %s117
      %p119 = scmp.eq.s32.totalorder %s30, 0
      %p120 = por %p118, %p119
      %s122 = sadd.s32 %s121, 1
      %p125 = scmp.eq.s32.totalorder %s24, 1
      %p126 = scmp.ne.s32.totalorder %s121, %s123
      %p127 = scmp.eq.s32.totalorder %s24, 0
      %p128 = por %p126, %p127
      %p129 = scmp.ne.s32.totalorder %s121, %s123
      %p130 = scmp.eq.s32.totalorder %s29, 1
      %p131 = por %p129, %p130
      %p132 = scmp.ne.s32.totalorder %s123, %s124
      %p133 = scmp.eq.s32.totalorder %s29, 0
      %p134 = por %p132, %p133
      %p135 = scmp.ne.s32.totalorder %s123, %s124
      %p136 = scmp.eq.s32.totalorder %s30, 1
      %p137 = por %p135, %p136
      %p139 = scmp.ne.s32.totalorder %s124, %s138
      %p140 = scmp.eq.s32.totalorder %s30, 0
      %p141 = por %p139, %p140
      %s143 = sadd.s32 %s142, 1
      %p146 = scmp.eq.s32.totalorder %s24, 1
      %p147 = scmp.ne.s32.totalorder %s142, %s144
      %p148 = scmp.eq.s32.totalorder %s24, 0
      %p149 = por %p147, %p148
      %p150 = scmp.ne.s32.totalorder %s142, %s144
      %p151 = scmp.eq.s32.totalorder %s29, 1
      %p152 = por %p150, %p151
      %p153 = scmp.ne.s32.totalorder %s144, %s145
      %p154 = scmp.eq.s32.totalorder %s29, 0
      %p155 = por %p153, %p154
      %p156 = scmp.ne.s32.totalorder %s144, %s145
      %p157 = scmp.eq.s32.totalorder %s30, 1
      %p158 = por %p156, %p157
      %p160 = scmp.ne.s32.totalorder %s145, %s159
      %p161 = scmp.eq.s32.totalorder %s30, 0
      %p162 = por %p160, %p161
      %s164 = sadd.s32 %s163, 1
      %p167 = scmp.eq.s32.totalorder %s24, 1
      %p168 = scmp.ne.s32.totalorder %s163, %s165
      %p169 = scmp.eq.s32.totalorder %s24, 0
      %p170 = por %p168, %p169
      %p171 = scmp.ne.s32.totalorder %s163, %s165
      %p172 = scmp.eq.s32.totalorder %s29, 1
      %p173 = por %p171, %p172
      %p174 = scmp.ne.s32.totalorder %s165, %s166
      %p175 = scmp.eq.s32.totalorder %s29, 0
      %p176 = por %p174, %p175
      %p177 = scmp.ne.s32.totalorder %s165, %s166
      %p178 = scmp.eq.s32.totalorder %s30, 1
      %p179 = por %p177, %p178
      %p181 = scmp.ne.s32.totalorder %s166, %s180
      %p182 = scmp.eq.s32.totalorder %s30, 0
      %p183 = por %p181, %p182
      %s185 = sadd.s32 %s184, 1
      %p188 = scmp.eq.s32.totalorder %s24, 1
      %p189 = scmp.ne.s32.totalorder %s184, %s186
      %p190 = scmp.eq.s32.totalorder %s24, 0
      %p191 = por %p189, %p190
      %p192 = scmp.ne.s32.totalorder %s184, %s186
      %p193 = scmp.eq.s32.totalorder %s29, 1
      %p194 = por %p192, %p193
      %p195 = scmp.ne.s32.totalorder %s186, %s187
      %p196 = scmp.eq.s32.totalorder %s29, 0
      %p197 = por %p195, %p196
      %p198 = scmp.ne.s32.totalorder %s186, %s187
      %p199 = scmp.eq.s32.totalorder %s30, 1
      %p200 = por %p198, %p199
      %p202 = scmp.ne.s32.totalorder %s187, %s201
      %p203 = scmp.eq.s32.totalorder %s30, 0
      %p204 = por %p202, %p203
      %s206 = sadd.s32 %s205, 1
      %p209 = scmp.eq.s32.totalorder %s24, 1
      %p210 = scmp.ne.s32.totalorder %s205, %s207
      %p211 = scmp.eq.s32.totalorder %s24, 0
      %p212 = por %p210, %p211
      %p213 = scmp.ne.s32.totalorder %s205, %s207
      %p214 = scmp.eq.s32.totalorder %s29, 1
      %p215 = por %p213, %p214
      %p216 = scmp.ne.s32.totalorder %s207, %s208
      %p217 = scmp.eq.s32.totalorder %s29, 0
      %p218 = por %p216, %p217
      %p219 = scmp.ne.s32.totalorder %s207, %s208
      %p220 = scmp.eq.s32.totalorder %s30, 1
      %p221 = por %p219, %p220
      %p223 = scmp.ne.s32.totalorder %s208, %s222
      %p224 = scmp.eq.s32.totalorder %s30, 0
      %p225 = por %p223, %p224
      %s226 = ssub.s32 %s24, %s31
      %p227 = scmp.eq.s32.totalorder %s226, 0
      %s229 = sadd.s32 %s228, 1
      %s230 = scalar_select %p227, %s228, %s229
      %p233 = pneg %p227
      %p234 = scmp.eq.s32.totalorder %s24, 1
      %p235 = por %p233, %p234
      %p236 = scmp.ne.s32.totalorder %s228, %s231
      %p237 = scmp.eq.s32.totalorder %s24, 0
      %p238 = por %p236, %p237
      %p239 = scmp.ne.s32.totalorder %s228, %s231
      %p240 = scmp.eq.s32.totalorder %s29, 1
      %p241 = por %p239, %p240
      %p242 = scmp.ne.s32.totalorder %s231, %s232
      %p243 = scmp.eq.s32.totalorder %s29, 0
      %p244 = por %p242, %p243
      %p245 = scmp.ne.s32.totalorder %s231, %s232
      %p246 = scmp.eq.s32.totalorder %s30, 1
      %p247 = por %p245, %p246
      %p249 = scmp.ne.s32.totalorder %s232, %s248
      %p250 = scmp.eq.s32.totalorder %s30, 0
      %p251 = por %p249, %p250
      %p252 = scmp.le.s32.totalorder 1, %s24
      %p253 = scmp.lt.s32.totalorder %s24, 3
      %p254 = pnand %p252, %p253
      %p255 = pneg %p254
      // Predicated region
      $region9: #{tpu_custom_call.1} parent=5 // pred_check
        _
      $region10: #{tpu_custom_call.1} parent=5 // pred_check_branch
        %257 = sbr.rel (%p254) target = $region12
      $region11: #{tpu_custom_call.1} parent=5 // pred_region
        %s258 = ssub.s32 %s24, 1
        // Predicated region
        $region13: #{tpu_custom_call.1} parent=11 // pred_check
          %p259 = pneg %p71
        $region14: #{tpu_custom_call.1} parent=11 // pred_check_branch
          %261 = sbr.rel (%p259) target = $region16
        $region15: #{tpu_custom_call.1} parent=11 // pred_region
          %263 = vsyncadd [#allocation6], 0
          %s264 = sshll.u32 %s1, 4
          %s265 = int_to_ptr.hbm [resolvable:$true] %s264
          %s266 = sshll.u32 [#allocation5], 4
          %s267 = int_to_ptr.vmem [resolvable:$true] %s266
          %272 = dma.hbm_to_vmem [thread:$0]  %s265, 6144, %s267, [#allocation6], 128, 128, 8
        $region16: #{tpu_custom_call.1} parent=11 // pred_fallthru
          _
        // Predicated region
        $region17: #{tpu_custom_call.1} parent=11 // pred_check
          %p273 = pneg %p92
        $region18: #{tpu_custom_call.1} parent=11 // pred_check_branch
          %275 = sbr.rel (%p273) target = $region20
        $region19: #{tpu_custom_call.1} parent=11 // pred_region
          %277 = vsyncadd [#allocation6], 0
          %s279 = sshll.u32 %s2, 4
          %s280 = int_to_ptr.hbm [resolvable:$true] %s279
          %s281 = sshll.u32 [#allocation7], 4
          %s282 = int_to_ptr.vmem [resolvable:$true] %s281
          %284 = dma.hbm_to_vmem [thread:$0]  %s280, 32, %s282, [#allocation6]
        $region20: #{tpu_custom_call.1} parent=11 // pred_fallthru
          _
        // Predicated region
        $region21: #{tpu_custom_call.1} parent=11 // pred_check
          %p285 = pneg %p113
        $region22: #{tpu_custom_call.1} parent=11 // pred_check_branch
          %287 = sbr.rel (%p285) target = $region24
        $region23: #{tpu_custom_call.1} parent=11 // pred_region
          %289 = vsyncadd [#allocation9], 0
          %s290 = sshll.u32 %s3, 4
          %s291 = int_to_ptr.hbm [resolvable:$true] %s290
          %s292 = sshll.u32 [#allocation8], 4
          %s293 = int_to_ptr.vmem [resolvable:$true] %s292
          %298 = dma.hbm_to_vmem [thread:$0]  %s291, 4096, %s293, [#allocation9], 128, 128, 8
        $region24: #{tpu_custom_call.1} parent=11 // pred_fallthru
          _
        // Predicated region
        $region25: #{tpu_custom_call.1} parent=11 // pred_check
          %p299 = pneg %p134
        $region26: #{tpu_custom_call.1} parent=11 // pred_check_branch
          %301 = sbr.rel (%p299) target = $region28
        $region27: #{tpu_custom_call.1} parent=11 // pred_region
          _
        $region28: #{tpu_custom_call.1} parent=11 // pred_fallthru
          _
        // Predicated region
        $region29: #{tpu_custom_call.1} parent=11 // pred_check
          %p302 = pneg %p155
        $region30: #{tpu_custom_call.1} parent=11 // pred_check_branch
          %304 = sbr.rel (%p302) target = $region32
        $region31: #{tpu_custom_call.1} parent=11 // pred_region
          %306 = vsyncadd [#allocation9], 0
          %s307 = sshll.u32 %s5, 4
          %s308 = int_to_ptr.hbm [resolvable:$true] %s307
          %s309 = sshll.u32 [#allocation10], 4
          %s310 = int_to_ptr.vmem [resolvable:$true] %s309
          %315 = dma.hbm_to_vmem [thread:$0]  %s308, 2048, %s310, [#allocation9], 64, 64, 4
        $region32: #{tpu_custom_call.1} parent=11 // pred_fallthru
          _
        // Predicated region
        $region33: #{tpu_custom_call.1} parent=11 // pred_check
          %p316 = pneg %p176
        $region34: #{tpu_custom_call.1} parent=11 // pred_check_branch
          %318 = sbr.rel (%p316) target = $region36
        $region35: #{tpu_custom_call.1} parent=11 // pred_region
          %320 = vsyncadd [#allocation12], 0
          %s322 = sshll.u32 %s6, 4
          %s323 = int_to_ptr.hbm [resolvable:$true] %s322
          %s324 = sshll.u32 [#allocation11], 4
          %s325 = int_to_ptr.vmem [resolvable:$true] %s324
          %327 = dma.hbm_to_vmem [thread:$0]  %s323, 16, %s325, [#allocation12]
        $region36: #{tpu_custom_call.1} parent=11 // pred_fallthru
          _
        // Predicated region
        $region37: #{tpu_custom_call.1} parent=11 // pred_check
          %p328 = pneg %p197
        $region38: #{tpu_custom_call.1} parent=11 // pred_check_branch
          %330 = sbr.rel (%p328) target = $region40
        $region39: #{tpu_custom_call.1} parent=11 // pred_region
          _
        $region40: #{tpu_custom_call.1} parent=11 // pred_fallthru
          _
        // Predicated region
        $region41: #{tpu_custom_call.1} parent=11 // pred_check
          %p331 = pneg %p218
        $region42: #{tpu_custom_call.1} parent=11 // pred_check_branch
          %333 = sbr.rel (%p331) target = $region44
        $region43: #{tpu_custom_call.1} parent=11 // pred_region
          %335 = vsyncadd [#allocation12], 0
          %s337 = sshll.u32 %s8, 4
          %s338 = int_to_ptr.hbm [resolvable:$true] %s337
          %s339 = sshll.u32 [#allocation13], 4
          %s340 = int_to_ptr.vmem [resolvable:$true] %s339
          %342 = dma.hbm_to_vmem [thread:$0]  %s338, 128, %s340, [#allocation12]
        $region44: #{tpu_custom_call.1} parent=11 // pred_fallthru
          _
      $region12: #{tpu_custom_call.1} parent=5 // pred_fallthru
        _
      %p343 = scmp.lt.s32.totalorder %s24, 2
      // Predicated region
      $region45: #{tpu_custom_call.1} parent=5 // pred_check
        %p344 = pneg %p343
      $region46: #{tpu_custom_call.1} parent=5 // pred_check_branch
        %346 = sbr.rel (%p344) target = $region48
      $region47: #{tpu_custom_call.1} parent=5 // pred_region
        // Predicated region
        $region49: #{tpu_custom_call.1} parent=47 // pred_check
          %p347 = pneg %p44
        $region50: #{tpu_custom_call.1} parent=47 // pred_check_branch
          %349 = sbr.rel (%p347) target = $region52
        $region51: #{tpu_custom_call.1} parent=47 // pred_region
          %s350 = sand.u32 %s34, 1
          %s351 = scalar_lea.sflag [#allocation3], %s350
          %s352 = sand.u32 %s34, 1
          %s353 = smul.addr %s352, 192
          %s354 = scalar_lea.vmem [#allocation2], %s353
          %s355 = smul.u32 8, %s24
          %357 = vsyncadd %s351, 0
          %s358 = smul.addr %s355, 3
          %s359 = smul.addr %s358, 8
          %s360 = scalar_lea.hbm %s0, %s359
          %s361 = sshll.u32 %s360, 4
          %s362 = int_to_ptr.hbm [resolvable:$true] %s361
          %s363 = sshll.u32 %s354, 4
          %s364 = int_to_ptr.vmem [resolvable:$true] %s363
          %369 = dma.hbm_to_vmem [thread:$0]  %s362, 3072, %s364, %s351, 384, 384, 24
        $region52: #{tpu_custom_call.1} parent=47 // pred_fallthru
          _
      $region48: #{tpu_custom_call.1} parent=5 // pred_fallthru
        _
      %p370 = scmp.le.s32.totalorder 1, %s24
      %p371 = scmp.lt.s32.totalorder %s24, 3
      %p372 = pnand %p370, %p371
      %p373 = pneg %p372
      // Predicated region
      $region53: #{tpu_custom_call.1} parent=5 // pred_check
        _
      $region54: #{tpu_custom_call.1} parent=5 // pred_check_branch
        %375 = sbr.rel (%p372) target = $region56
      $region55: #{tpu_custom_call.1} parent=5 // pred_region
        %s376 = ssub.s32 %s24, 1
        %s377 = sand.u32 %s37, 1
        %s378 = scalar_lea.sflag [#allocation3], %s377
        %s379 = sand.u32 %s37, 1
        %s380 = smul.addr %s379, 192
        %s381 = scalar_lea.vmem [#allocation2], %s380
        // Predicated region
        $region57: #{tpu_custom_call.1} parent=55 // pred_check
          %p382 = pneg %p50
        $region58: #{tpu_custom_call.1} parent=55 // pred_check_branch
          %384 = sbr.rel (%p382) target = $region60
        $region59: #{tpu_custom_call.1} parent=55 // pred_region
          %386 = dma.done %s378, 3072
        $region60: #{tpu_custom_call.1} parent=55 // pred_fallthru
          _
        // Predicated region
        $region61: #{tpu_custom_call.1} parent=55 // pred_check
          %p387 = pneg %p71
        $region62: #{tpu_custom_call.1} parent=55 // pred_check_branch
          %389 = sbr.rel (%p387) target = $region64
        $region63: #{tpu_custom_call.1} parent=55 // pred_region
          %391 = dma.done [#allocation6], 6144
        $region64: #{tpu_custom_call.1} parent=55 // pred_fallthru
          _
        // Predicated region
        $region65: #{tpu_custom_call.1} parent=55 // pred_check
          %p392 = pneg %p92
        $region66: #{tpu_custom_call.1} parent=55 // pred_check_branch
          %394 = sbr.rel (%p392) target = $region68
        $region67: #{tpu_custom_call.1} parent=55 // pred_region
          %396 = dma.done [#allocation6], 32
        $region68: #{tpu_custom_call.1} parent=55 // pred_fallthru
          _
        // Predicated region
        $region69: #{tpu_custom_call.1} parent=55 // pred_check
          %p397 = pneg %p113
        $region70: #{tpu_custom_call.1} parent=55 // pred_check_branch
          %399 = sbr.rel (%p397) target = $region72
        $region71: #{tpu_custom_call.1} parent=55 // pred_region
          %401 = dma.done [#allocation9], 4096
        $region72: #{tpu_custom_call.1} parent=55 // pred_fallthru
          _
        // Predicated region
        $region73: #{tpu_custom_call.1} parent=55 // pred_check
          %p402 = pneg %p155
        $region74: #{tpu_custom_call.1} parent=55 // pred_check_branch
          %404 = sbr.rel (%p402) target = $region76
        $region75: #{tpu_custom_call.1} parent=55 // pred_region
          %406 = dma.done [#allocation9], 2048
        $region76: #{tpu_custom_call.1} parent=55 // pred_fallthru
          _
        // Predicated region
        $region77: #{tpu_custom_call.1} parent=55 // pred_check
          %p407 = pneg %p176
        $region78: #{tpu_custom_call.1} parent=55 // pred_check_branch
          %409 = sbr.rel (%p407) target = $region80
        $region79: #{tpu_custom_call.1} parent=55 // pred_region
          %411 = dma.done [#allocation12], 16
        $region80: #{tpu_custom_call.1} parent=55 // pred_fallthru
          _
        // Predicated region
        $region81: #{tpu_custom_call.1} parent=55 // pred_check
          %p412 = pneg %p218
        $region82: #{tpu_custom_call.1} parent=55 // pred_check_branch
          %414 = sbr.rel (%p412) target = $region84
        $region83: #{tpu_custom_call.1} parent=55 // pred_region
          %416 = dma.done [#allocation12], 128
        $region84: #{tpu_custom_call.1} parent=55 // pred_fallthru
          _
        %s417 = sand.u32 %s37, 1
        %s418 = scalar_lea.sflag [#allocation3], %s417
        %s419 = sand.u32 %s37, 1
        %s420 = smul.addr %s419, 192
        %s421 = scalar_lea.vmem [#allocation2], %s420
        %p422 = pneg %p50
        %p423 = pneg %p47
        %p424 = pneg %p71
        %p425 = pneg %p68
        %p426 = pneg %p92
        %p427 = pneg %p89
        %p428 = pneg %p113
        %p429 = pneg %p110
        %p430 = pneg %p134
        %p431 = pneg %p131
        %p432 = pneg %p155
        %p433 = pneg %p152
        %p434 = pneg %p176
        %p435 = pneg %p173
        %p436 = pneg %p197
        %p437 = pneg %p194
        %p438 = pneg %p218
        %p439 = pneg %p215
        %p440 = pneg %p244
        %p441 = pneg %p241
        %s442 = sand.u32 %s231, 1
        %s443 = scalar_lea.sflag [#allocation4], %s442
        %s444 = sand.u32 %s231, 1
        %s445 = smul.addr %s444, 64
        %s446 = scalar_lea.vmem [#allocation14], %s445
        %s447 = smul.u32 8, %s29
        %s448 = smul.u32 8, %s29
        %v449 = vld [vmem:[%s381] sm:$0xff]
        %v450 = vld [vmem:[%s381 + $0x8] sm:$0xff]
        %v451 = vld [vmem:[%s381 + $0x10] sm:$0xff]
        %v452 = vld [vmem:[%s381 + $0x18] sm:$0xff]
        %v453 = vld [vmem:[%s381 + $0x20] sm:$0xff]
        %v454 = vld [vmem:[%s381 + $0x28] sm:$0xff]
        %v455 = vld [vmem:[%s381 + $0x30] sm:$0xff]
        %v456 = vld [vmem:[%s381 + $0x38] sm:$0xff]
        %v457 = vld [vmem:[%s381 + $0x40] sm:$0xff]
        %v458 = vld [vmem:[%s381 + $0x48] sm:$0xff]
        %v459 = vld [vmem:[%s381 + $0x50] sm:$0xff]
        %v460 = vld [vmem:[%s381 + $0x58] sm:$0xff]
        %v461 = vld [vmem:[%s381 + $0x60] sm:$0xff]
        %v462 = vld [vmem:[%s381 + $0x68] sm:$0xff]
        %v463 = vld [vmem:[%s381 + $0x70] sm:$0xff]
        %v464 = vld [vmem:[%s381 + $0x78] sm:$0xff]
        %v465 = vld [vmem:[%s381 + $0x80] sm:$0xff]
        %v466 = vld [vmem:[%s381 + $0x88] sm:$0xff]
        %v467 = vld [vmem:[%s381 + $0x90] sm:$0xff]
        %v468 = vld [vmem:[%s381 + $0x98] sm:$0xff]
        %v469 = vld [vmem:[%s381 + $0xa0] sm:$0xff]
        %v470 = vld [vmem:[%s381 + $0xa8] sm:$0xff]
        %v471 = vld [vmem:[%s381 + $0xb0] sm:$0xff]
        %v472 = vld [vmem:[%s381 + $0xb8] sm:$0xff]
        %v473 = vpack.c.bf16 %v452, %v449
        %v474 = vpack.c.bf16 %v453, %v450
        %v475 = vpack.c.bf16 %v454, %v451
        %v476 = vpack.c.bf16 %v458, %v455
        %v477 = vpack.c.bf16 %v459, %v456
        %v478 = vpack.c.bf16 %v460, %v457
        %v479 = vpack.c.bf16 %v464, %v461
        %v480 = vpack.c.bf16 %v465, %v462
        %v481 = vpack.c.bf16 %v466, %v463
        %v482 = vpack.c.bf16 %v470, %v467
        %v483 = vpack.c.bf16 %v471, %v468
        %v484 = vpack.c.bf16 %v472, %v469
        %v485 = vld [vmem:[#allocation5] sm:$0xff]
        %v486 = vld [vmem:[#allocation5 + $0x8] sm:$0xff]
        %v487 = vld [vmem:[#allocation5 + $0x10] sm:$0xff]
        %v488 = vld [vmem:[#allocation5 + $0x18] sm:$0xff]
        %v489 = vld [vmem:[#allocation5 + $0x20] sm:$0xff]
        %v490 = vld [vmem:[#allocation5 + $0x28] sm:$0xff]
        %v491 = vld [vmem:[#allocation5 + $0x30] sm:$0xff]
        %v492 = vld [vmem:[#allocation5 + $0x38] sm:$0xff]
        %v493 = vld [vmem:[#allocation5 + $0x40] sm:$0xff]
        %v494 = vld [vmem:[#allocation5 + $0x48] sm:$0xff]
        %v495 = vld [vmem:[#allocation5 + $0x50] sm:$0xff]
        %v496 = vld [vmem:[#allocation5 + $0x58] sm:$0xff]
        %v497 = vld [vmem:[#allocation5 + $0x60] sm:$0xff]
        %v498 = vld [vmem:[#allocation5 + $0x68] sm:$0xff]
        %v499 = vld [vmem:[#allocation5 + $0x70] sm:$0xff]
        %v500 = vld [vmem:[#allocation5 + $0x78] sm:$0xff]
        %v501 = vld [vmem:[#allocation5 + $0x80] sm:$0xff]
        %v502 = vld [vmem:[#allocation5 + $0x88] sm:$0xff]
        %v503 = vld [vmem:[#allocation5 + $0x90] sm:$0xff]
        %v504 = vld [vmem:[#allocation5 + $0x98] sm:$0xff]
        %v505 = vld [vmem:[#allocation5 + $0xa0] sm:$0xff]
        %v506 = vld [vmem:[#allocation5 + $0xa8] sm:$0xff]
        %v507 = vld [vmem:[#allocation5 + $0xb0] sm:$0xff]
        %v508 = vld [vmem:[#allocation5 + $0xb8] sm:$0xff]
        %v509 = vld [vmem:[#allocation5 + $0xc0] sm:$0xff]
        %v510 = vld [vmem:[#allocation5 + $0xc8] sm:$0xff]
        %v511 = vld [vmem:[#allocation5 + $0xd0] sm:$0xff]
        %v512 = vld [vmem:[#allocation5 + $0xd8] sm:$0xff]
        %v513 = vld [vmem:[#allocation5 + $0xe0] sm:$0xff]
        %v514 = vld [vmem:[#allocation5 + $0xe8] sm:$0xff]
        %v515 = vld [vmem:[#allocation5 + $0xf0] sm:$0xff]
        %v516 = vld [vmem:[#allocation5 + $0xf8] sm:$0xff]
        %v517 = vld [vmem:[#allocation5 + $0x100] sm:$0xff]
        %v518 = vld [vmem:[#allocation5 + $0x108] sm:$0xff]
        %v519 = vld [vmem:[#allocation5 + $0x110] sm:$0xff]
        %v520 = vld [vmem:[#allocation5 + $0x118] sm:$0xff]
        %v521 = vld [vmem:[#allocation5 + $0x120] sm:$0xff]
        %v522 = vld [vmem:[#allocation5 + $0x128] sm:$0xff]
        %v523 = vld [vmem:[#allocation5 + $0x130] sm:$0xff]
        %v524 = vld [vmem:[#allocation5 + $0x138] sm:$0xff]
        %v525 = vld [vmem:[#allocation5 + $0x140] sm:$0xff]
        %v526 = vld [vmem:[#allocation5 + $0x148] sm:$0xff]
        %v527 = vld [vmem:[#allocation5 + $0x150] sm:$0xff]
        %v528 = vld [vmem:[#allocation5 + $0x158] sm:$0xff]
        %v529 = vld [vmem:[#allocation5 + $0x160] sm:$0xff]
        %v530 = vld [vmem:[#allocation5 + $0x168] sm:$0xff]
        %v531 = vld [vmem:[#allocation5 + $0x170] sm:$0xff]
        %v532 = vld [vmem:[#allocation5 + $0x178] sm:$0xff]
        %v533 = vld [vmem:[#allocation7] sm:$0x3]
        %v535 = vperm.slane %v533, 0
        %v536 = vperm.slane %v533, 1
        %v587 = vunpack.c.l.b16 %v485
        %v588 = vunpack.c.h.b16 %v485
        %v589 = vunpack.c.l.b16 %v486
        %v590 = vunpack.c.h.b16 %v486
        %v591 = vunpack.c.l.b16 %v487
        %v592 = vunpack.c.h.b16 %v487
        %v593 = vunpack.c.l.b16 %v488
        %v594 = vunpack.c.h.b16 %v488
        %v595 = vunpack.c.l.b16 %v489
        %v596 = vunpack.c.h.b16 %v489
        %v597 = vunpack.c.l.b16 %v490
        %v598 = vunpack.c.h.b16 %v490
        %v599 = vunpack.c.l.b16 %v491
        %v600 = vunpack.c.h.b16 %v491
        %v601 = vunpack.c.l.b16 %v492
        %v602 = vunpack.c.h.b16 %v492
        %v603 = vunpack.c.l.b16 %v493
        %v604 = vunpack.c.h.b16 %v493
        %v605 = vunpack.c.l.b16 %v494
        %v606 = vunpack.c.h.b16 %v494
        %v607 = vunpack.c.l.b16 %v495
        %v608 = vunpack.c.h.b16 %v495
        %v609 = vunpack.c.l.b16 %v496
        %v610 = vunpack.c.h.b16 %v496
        %v611 = vunpack.c.l.b16 %v497
        %v612 = vunpack.c.h.b16 %v497
        %v613 = vunpack.c.l.b16 %v498
        %v614 = vunpack.c.h.b16 %v498
        %v615 = vunpack.c.l.b16 %v499
        %v616 = vunpack.c.h.b16 %v499
        %v617 = vunpack.c.l.b16 %v500
        %v618 = vunpack.c.h.b16 %v500
        %v619 = vunpack.c.l.b16 %v501
        %v620 = vunpack.c.h.b16 %v501
        %v621 = vunpack.c.l.b16 %v502
        %v622 = vunpack.c.h.b16 %v502
        %v623 = vunpack.c.l.b16 %v503
        %v624 = vunpack.c.h.b16 %v503
        %v625 = vunpack.c.l.b16 %v504
        %v626 = vunpack.c.h.b16 %v504
        %v627 = vunpack.c.l.b16 %v505
        %v628 = vunpack.c.h.b16 %v505
        %v629 = vunpack.c.l.b16 %v506
        %v630 = vunpack.c.h.b16 %v506
        %v631 = vunpack.c.l.b16 %v507
        %v632 = vunpack.c.h.b16 %v507
        %v633 = vunpack.c.l.b16 %v508
        %v634 = vunpack.c.h.b16 %v508
        %v635 = vunpack.c.l.b16 %v509
        %v636 = vunpack.c.h.b16 %v509
        %v637 = vunpack.c.l.b16 %v510
        %v638 = vunpack.c.h.b16 %v510
        %v639 = vunpack.c.l.b16 %v511
        %v640 = vunpack.c.h.b16 %v511
        %v641 = vunpack.c.l.b16 %v512
        %v642 = vunpack.c.h.b16 %v512
        %v643 = vunpack.c.l.b16 %v513
        %v644 = vunpack.c.h.b16 %v513
        %v645 = vunpack.c.l.b16 %v514
        %v646 = vunpack.c.h.b16 %v514
        %v647 = vunpack.c.l.b16 %v515
        %v648 = vunpack.c.h.b16 %v515
        %v649 = vunpack.c.l.b16 %v516
        %v650 = vunpack.c.h.b16 %v516
        %v651 = vunpack.c.l.b16 %v517
        %v652 = vunpack.c.h.b16 %v517
        %v653 = vunpack.c.l.b16 %v518
        %v654 = vunpack.c.h.b16 %v518
        %v655 = vunpack.c.l.b16 %v519
        %v656 = vunpack.c.h.b16 %v519
        %v657 = vunpack.c.l.b16 %v520
        %v658 = vunpack.c.h.b16 %v520
        %v659 = vunpack.c.l.b16 %v521
        %v660 = vunpack.c.h.b16 %v521
        %v661 = vunpack.c.l.b16 %v522
        %v662 = vunpack.c.h.b16 %v522
        %v663 = vunpack.c.l.b16 %v523
        %v664 = vunpack.c.h.b16 %v523
        %v665 = vunpack.c.l.b16 %v524
        %v666 = vunpack.c.h.b16 %v524
        %v667 = vunpack.c.l.b16 %v525
        %v668 = vunpack.c.h.b16 %v525
        %v669 = vunpack.c.l.b16 %v526
        %v670 = vunpack.c.h.b16 %v526
        %v671 = vunpack.c.l.b16 %v527
        %v672 = vunpack.c.h.b16 %v527
        %v673 = vunpack.c.l.b16 %v528
        %v674 = vunpack.c.h.b16 %v528
        %v675 = vunpack.c.l.b16 %v529
        %v676 = vunpack.c.h.b16 %v529
        %v677 = vunpack.c.l.b16 %v530
        %v678 = vunpack.c.h.b16 %v530
        %v679 = vunpack.c.l.b16 %v531
        %v680 = vunpack.c.h.b16 %v531
        %v681 = vunpack.c.l.b16 %v532
        %v682 = vunpack.c.h.b16 %v532
        %v683 = vpack.c.b16 %v589, %v587
        %v684 = vpack.c.b16 %v590, %v588
        %v685 = vpack.c.b16 %v593, %v591
        %v686 = vpack.c.b16 %v594, %v592
        %v687 = vpack.c.b16 %v597, %v595
        %v688 = vpack.c.b16 %v598, %v596
        %v689 = vpack.c.b16 %v601, %v599
        %v690 = vpack.c.b16 %v602, %v600
        %v691 = vpack.c.b16 %v605, %v603
        %v692 = vpack.c.b16 %v606, %v604
        %v693 = vpack.c.b16 %v609, %v607
        %v694 = vpack.c.b16 %v610, %v608
        %v695 = vpack.c.b16 %v613, %v611
        %v696 = vpack.c.b16 %v614, %v612
        %v697 = vpack.c.b16 %v617, %v615
        %v698 = vpack.c.b16 %v618, %v616
        %v699 = vpack.c.b16 %v621, %v619
        %v700 = vpack.c.b16 %v622, %v620
        %v701 = vpack.c.b16 %v625, %v623
        %v702 = vpack.c.b16 %v626, %v624
        %v703 = vpack.c.b16 %v629, %v627
        %v704 = vpack.c.b16 %v630, %v628
        %v705 = vpack.c.b16 %v633, %v631
        %v706 = vpack.c.b16 %v634, %v632
        %v707 = vpack.c.b16 %v637, %v635
        %v708 = vpack.c.b16 %v638, %v636
        %v709 = vpack.c.b16 %v641, %v639
        %v710 = vpack.c.b16 %v642, %v640
        %v711 = vpack.c.b16 %v645, %v643
        %v712 = vpack.c.b16 %v646, %v644
        %v713 = vpack.c.b16 %v649, %v647
        %v714 = vpack.c.b16 %v650, %v648
        %v715 = vpack.c.b16 %v653, %v651
        %v716 = vpack.c.b16 %v654, %v652
        %v717 = vpack.c.b16 %v657, %v655
        %v718 = vpack.c.b16 %v658, %v656
        %v719 = vpack.c.b16 %v661, %v659
        %v720 = vpack.c.b16 %v662, %v660
        %v721 = vpack.c.b16 %v665, %v663
        %v722 = vpack.c.b16 %v666, %v664
        %v723 = vpack.c.b16 %v669, %v667
        %v724 = vpack.c.b16 %v670, %v668
        %v725 = vpack.c.b16 %v673, %v671
        %v726 = vpack.c.b16 %v674, %v672
        %v727 = vpack.c.b16 %v677, %v675
        %v728 = vpack.c.b16 %v678, %v676
        %v729 = vpack.c.b16 %v681, %v679
        %v730 = vpack.c.b16 %v682, %v680
        %779 = vmatpush.bf16.msra.mxu0 %v697
        %780 = vmatpush.bf16.msra.mxu0 %v695
        %781 = vmatpush.bf16.msra.mxu0 %v693
        %782 = vmatpush.bf16.msra.mxu0 %v691
        %783 = vmatpush.bf16.msra.mxu0 %v689
        %784 = vmatpush.bf16.msra.mxu0 %v687
        %785 = vmatpush.bf16.msra.mxu0 %v685
        %786 = vmatpush.bf16.msra.mxu0 %v683
        %787 = vmatmul.bf16.gmra.mxu0 %v473
        %v788 = vpop.f32.mrf.mxu0
        %v789 = vadd.f32 %v535, %v788
        %v790 = vpop.f32.mrf.mxu0
        %v791 = vadd.f32 %v535, %v790
        %792 = vmatmul.bf16.gmra.mxu0 %v476
        %v793 = vpop.f32.mrf.mxu0
        %v794 = vadd.f32 %v535, %v793
        %v795 = vpop.f32.mrf.mxu0
        %v796 = vadd.f32 %v535, %v795
        %797 = vmatmul.bf16.gmra.mxu0 %v479
        %v798 = vpop.f32.mrf.mxu0
        %v799 = vadd.f32 %v535, %v798
        %v800 = vpop.f32.mrf.mxu0
        %v801 = vadd.f32 %v535, %v800
        %802 = vmatmul.bf16.gmra.mxu0 %v482
        %v803 = vpop.f32.mrf.mxu0
        %v804 = vadd.f32 %v535, %v803
        %v805 = vpop.f32.mrf.mxu0
        %v806 = vadd.f32 %v535, %v805
        %807 = vdwg.mxu0
        %808 = vmatpush.bf16.msra.mxu0 %v713
        %809 = vmatpush.bf16.msra.mxu0 %v711
        %810 = vmatpush.bf16.msra.mxu0 %v709
        %811 = vmatpush.bf16.msra.mxu0 %v707
        %812 = vmatpush.bf16.msra.mxu0 %v705
        %813 = vmatpush.bf16.msra.mxu0 %v703
        %814 = vmatpush.bf16.msra.mxu0 %v701
        %815 = vmatpush.bf16.msra.mxu0 %v699
        %816 = vmatmul.bf16.gmra.mxu0 %v474
        %v817 = vpop.f32.mrf.mxu0
        %v818 = vadd.f32 %v789, %v817
        %v819 = vpop.f32.mrf.mxu0
        %v820 = vadd.f32 %v791, %v819
        %821 = vmatmul.bf16.gmra.mxu0 %v477
        %v822 = vpop.f32.mrf.mxu0
        %v823 = vadd.f32 %v794, %v822
        %v824 = vpop.f32.mrf.mxu0
        %v825 = vadd.f32 %v796, %v824
        %826 = vmatmul.bf16.gmra.mxu0 %v480
        %v827 = vpop.f32.mrf.mxu0
        %v828 = vadd.f32 %v799, %v827
        %v829 = vpop.f32.mrf.mxu0
        %v830 = vadd.f32 %v801, %v829
        %831 = vmatmul.bf16.gmra.mxu0 %v483
        %v832 = vpop.f32.mrf.mxu0
        %v833 = vadd.f32 %v804, %v832
        %v834 = vpop.f32.mrf.mxu0
        %v835 = vadd.f32 %v806, %v834
        %836 = vdwg.mxu0
        %837 = vmatpush.bf16.msra.mxu0 %v729
        %838 = vmatpush.bf16.msra.mxu0 %v727
        %839 = vmatpush.bf16.msra.mxu0 %v725
        %840 = vmatpush.bf16.msra.mxu0 %v723
        %841 = vmatpush.bf16.msra.mxu0 %v721
        %842 = vmatpush.bf16.msra.mxu0 %v719
        %843 = vmatpush.bf16.msra.mxu0 %v717
        %844 = vmatpush.bf16.msra.mxu0 %v715
        %845 = vmatmul.bf16.gmra.mxu0 %v475
        %v846 = vpop.f32.mrf.mxu0
        %v847 = vadd.f32 %v818, %v846
        %v848 = vpop.f32.mrf.mxu0
        %v849 = vadd.f32 %v820, %v848
        %850 = vmatmul.bf16.gmra.mxu0 %v478
        %v851 = vpop.f32.mrf.mxu0
        %v852 = vadd.f32 %v823, %v851
        %v853 = vpop.f32.mrf.mxu0
        %v854 = vadd.f32 %v825, %v853
        %855 = vmatmul.bf16.gmra.mxu0 %v481
        %v856 = vpop.f32.mrf.mxu0
        %v857 = vadd.f32 %v828, %v856
        %v858 = vpop.f32.mrf.mxu0
        %v859 = vadd.f32 %v830, %v858
        %860 = vmatmul.bf16.gmra.mxu0 %v484
        %v861 = vpop.f32.mrf.mxu0
        %v862 = vadd.f32 %v833, %v861
        %v863 = vpop.f32.mrf.mxu0
        %v864 = vadd.f32 %v835, %v863
        %865 = vdwg.mxu0
        %866 = vmatpush.bf16.msra.mxu0 %v698
        %867 = vmatpush.bf16.msra.mxu0 %v696
        %868 = vmatpush.bf16.msra.mxu0 %v694
        %869 = vmatpush.bf16.msra.mxu0 %v692
        %870 = vmatpush.bf16.msra.mxu0 %v690
        %871 = vmatpush.bf16.msra.mxu0 %v688
        %872 = vmatpush.bf16.msra.mxu0 %v686
        %873 = vmatpush.bf16.msra.mxu0 %v684
        %874 = vmatmul.bf16.gmra.mxu0 %v473
        %v875 = vpop.f32.mrf.mxu0
        %v876 = vadd.f32 %v536, %v875
        %v877 = vpop.f32.mrf.mxu0
        %v878 = vadd.f32 %v536, %v877
        %879 = vmatmul.bf16.gmra.mxu0 %v476
        %v880 = vpop.f32.mrf.mxu0
        %v881 = vadd.f32 %v536, %v880
        %v882 = vpop.f32.mrf.mxu0
        %v883 = vadd.f32 %v536, %v882
        %884 = vmatmul.bf16.gmra.mxu0 %v479
        %v885 = vpop.f32.mrf.mxu0
        %v886 = vadd.f32 %v536, %v885
        %v887 = vpop.f32.mrf.mxu0
        %v888 = vadd.f32 %v536, %v887
        %889 = vmatmul.bf16.gmra.mxu0 %v482
        %v890 = vpop.f32.mrf.mxu0
        %v891 = vadd.f32 %v536, %v890
        %v892 = vpop.f32.mrf.mxu0
        %v893 = vadd.f32 %v536, %v892
        %894 = vdwg.mxu0
        %895 = vmatpush.bf16.msra.mxu0 %v714
        %896 = vmatpush.bf16.msra.mxu0 %v712
        %897 = vmatpush.bf16.msra.mxu0 %v710
        %898 = vmatpush.bf16.msra.mxu0 %v708
        %899 = vmatpush.bf16.msra.mxu0 %v706
        %900 = vmatpush.bf16.msra.mxu0 %v704
        %901 = vmatpush.bf16.msra.mxu0 %v702
        %902 = vmatpush.bf16.msra.mxu0 %v700
        %903 = vmatmul.bf16.gmra.mxu0 %v474
        %v904 = vpop.f32.mrf.mxu0
        %v905 = vadd.f32 %v876, %v904
        %v906 = vpop.f32.mrf.mxu0
        %v907 = vadd.f32 %v878, %v906
        %908 = vmatmul.bf16.gmra.mxu0 %v477
        %v909 = vpop.f32.mrf.mxu0
        %v910 = vadd.f32 %v881, %v909
        %v911 = vpop.f32.mrf.mxu0
        %v912 = vadd.f32 %v883, %v911
        %913 = vmatmul.bf16.gmra.mxu0 %v480
        %v914 = vpop.f32.mrf.mxu0
        %v915 = vadd.f32 %v886, %v914
        %v916 = vpop.f32.mrf.mxu0
        %v917 = vadd.f32 %v888, %v916
        %918 = vmatmul.bf16.gmra.mxu0 %v483
        %v919 = vpop.f32.mrf.mxu0
        %v920 = vadd.f32 %v891, %v919
        %v921 = vpop.f32.mrf.mxu0
        %v922 = vadd.f32 %v893, %v921
        %923 = vdwg.mxu0
        %924 = vmatpush.bf16.msra.mxu0 %v730
        %925 = vmatpush.bf16.msra.mxu0 %v728
        %926 = vmatpush.bf16.msra.mxu0 %v726
        %927 = vmatpush.bf16.msra.mxu0 %v724
        %928 = vmatpush.bf16.msra.mxu0 %v722
        %929 = vmatpush.bf16.msra.mxu0 %v720
        %930 = vmatpush.bf16.msra.mxu0 %v718
        %931 = vmatpush.bf16.msra.mxu0 %v716
        %932 = vmatmul.bf16.gmra.mxu0 %v475
        %v933 = vpop.f32.mrf.mxu0
        %v934 = vadd.f32 %v905, %v933
        %v935 = vpop.f32.mrf.mxu0
        %v936 = vadd.f32 %v907, %v935
        %937 = vmatmul.bf16.gmra.mxu0 %v478
        %v938 = vpop.f32.mrf.mxu0
        %v939 = vadd.f32 %v910, %v938
        %v940 = vpop.f32.mrf.mxu0
        %v941 = vadd.f32 %v912, %v940
        %942 = vmatmul.bf16.gmra.mxu0 %v481
        %v943 = vpop.f32.mrf.mxu0
        %v944 = vadd.f32 %v915, %v943
        %v945 = vpop.f32.mrf.mxu0
        %v946 = vadd.f32 %v917, %v945
        %947 = vmatmul.bf16.gmra.mxu0 %v484
        %v948 = vpop.f32.mrf.mxu0
        %v949 = vadd.f32 %v920, %v948
        %v950 = vpop.f32.mrf.mxu0
        %v951 = vadd.f32 %v922, %v950
        %952 = vdwg.mxu0
        %v953 = vmax.f32 %v847, 0.0
        %v954 = vmax.f32 %v934, 0.0
        %v955 = vmax.f32 %v849, 0.0
        %v956 = vmax.f32 %v936, 0.0
        %v957 = vmax.f32 %v852, 0.0
        %v958 = vmax.f32 %v939, 0.0
        %v959 = vmax.f32 %v854, 0.0
        %v960 = vmax.f32 %v941, 0.0
        %v961 = vmax.f32 %v857, 0.0
        %v962 = vmax.f32 %v944, 0.0
        %v963 = vmax.f32 %v859, 0.0
        %v964 = vmax.f32 %v946, 0.0
        %v965 = vmax.f32 %v862, 0.0
        %v966 = vmax.f32 %v949, 0.0
        %v967 = vmax.f32 %v864, 0.0
        %v968 = vmax.f32 %v951, 0.0
        %v969 = vpack.c.bf16 %v955, %v953
        %v970 = vpack.c.bf16 %v956, %v954
        %v971 = vpack.c.bf16 %v959, %v957
        %v972 = vpack.c.bf16 %v960, %v958
        %v973 = vpack.c.bf16 %v963, %v961
        %v974 = vpack.c.bf16 %v964, %v962
        %v975 = vpack.c.bf16 %v967, %v965
        %v976 = vpack.c.bf16 %v968, %v966
        %v977 = vld [vmem:[#allocation8] sm:$0xff]
        %v978 = vld [vmem:[#allocation8 + $0x8] sm:$0xff]
        %v979 = vld [vmem:[#allocation8 + $0x10] sm:$0xff]
        %v980 = vld [vmem:[#allocation8 + $0x18] sm:$0xff]
        %v981 = vld [vmem:[#allocation8 + $0x20] sm:$0xff]
        %v982 = vld [vmem:[#allocation8 + $0x28] sm:$0xff]
        %v983 = vld [vmem:[#allocation8 + $0x30] sm:$0xff]
        %v984 = vld [vmem:[#allocation8 + $0x38] sm:$0xff]
        %v985 = vld [vmem:[#allocation8 + $0x40] sm:$0xff]
        %v986 = vld [vmem:[#allocation8 + $0x48] sm:$0xff]
        %v987 = vld [vmem:[#allocation8 + $0x50] sm:$0xff]
        %v988 = vld [vmem:[#allocation8 + $0x58] sm:$0xff]
        %v989 = vld [vmem:[#allocation8 + $0x60] sm:$0xff]
        %v990 = vld [vmem:[#allocation8 + $0x68] sm:$0xff]
        %v991 = vld [vmem:[#allocation8 + $0x70] sm:$0xff]
        %v992 = vld [vmem:[#allocation8 + $0x78] sm:$0xff]
        %v993 = vld [vmem:[#allocation8 + $0x80] sm:$0xff]
        %v994 = vld [vmem:[#allocation8 + $0x88] sm:$0xff]
        %v995 = vld [vmem:[#allocation8 + $0x90] sm:$0xff]
        %v996 = vld [vmem:[#allocation8 + $0x98] sm:$0xff]
        %v997 = vld [vmem:[#allocation8 + $0xa0] sm:$0xff]
        %v998 = vld [vmem:[#allocation8 + $0xa8] sm:$0xff]
        %v999 = vld [vmem:[#allocation8 + $0xb0] sm:$0xff]
        %v1000 = vld [vmem:[#allocation8 + $0xb8] sm:$0xff]
        %v1001 = vld [vmem:[#allocation8 + $0xc0] sm:$0xff]
        %v1002 = vld [vmem:[#allocation8 + $0xc8] sm:$0xff]
        %v1003 = vld [vmem:[#allocation8 + $0xd0] sm:$0xff]
        %v1004 = vld [vmem:[#allocation8 + $0xd8] sm:$0xff]
        %v1005 = vld [vmem:[#allocation8 + $0xe0] sm:$0xff]
        %v1006 = vld [vmem:[#allocation8 + $0xe8] sm:$0xff]
        %v1007 = vld [vmem:[#allocation8 + $0xf0] sm:$0xff]
        %v1008 = vld [vmem:[#allocation8 + $0xf8] sm:$0xff]
        %v1009 = vld [vmem:[%s4] sm:$0x3]
        %v1011 = vperm.slane %v1009, 0
        %v1012 = vperm.slane %v1009, 1
        %v1047 = vunpack.c.l.b16 %v977
        %v1048 = vunpack.c.h.b16 %v977
        %v1049 = vunpack.c.l.b16 %v978
        %v1050 = vunpack.c.h.b16 %v978
        %v1051 = vunpack.c.l.b16 %v979
        %v1052 = vunpack.c.h.b16 %v979
        %v1053 = vunpack.c.l.b16 %v980
        %v1054 = vunpack.c.h.b16 %v980
        %v1055 = vunpack.c.l.b16 %v981
        %v1056 = vunpack.c.h.b16 %v981
        %v1057 = vunpack.c.l.b16 %v982
        %v1058 = vunpack.c.h.b16 %v982
        %v1059 = vunpack.c.l.b16 %v983
        %v1060 = vunpack.c.h.b16 %v983
        %v1061 = vunpack.c.l.b16 %v984
        %v1062 = vunpack.c.h.b16 %v984
        %v1063 = vunpack.c.l.b16 %v985
        %v1064 = vunpack.c.h.b16 %v985
        %v1065 = vunpack.c.l.b16 %v986
        %v1066 = vunpack.c.h.b16 %v986
        %v1067 = vunpack.c.l.b16 %v987
        %v1068 = vunpack.c.h.b16 %v987
        %v1069 = vunpack.c.l.b16 %v988
        %v1070 = vunpack.c.h.b16 %v988
        %v1071 = vunpack.c.l.b16 %v989
        %v1072 = vunpack.c.h.b16 %v989
        %v1073 = vunpack.c.l.b16 %v990
        %v1074 = vunpack.c.h.b16 %v990
        %v1075 = vunpack.c.l.b16 %v991
        %v1076 = vunpack.c.h.b16 %v991
        %v1077 = vunpack.c.l.b16 %v992
        %v1078 = vunpack.c.h.b16 %v992
        %v1079 = vunpack.c.l.b16 %v993
        %v1080 = vunpack.c.h.b16 %v993
        %v1081 = vunpack.c.l.b16 %v994
        %v1082 = vunpack.c.h.b16 %v994
        %v1083 = vunpack.c.l.b16 %v995
        %v1084 = vunpack.c.h.b16 %v995
        %v1085 = vunpack.c.l.b16 %v996
        %v1086 = vunpack.c.h.b16 %v996
        %v1087 = vunpack.c.l.b16 %v997
        %v1088 = vunpack.c.h.b16 %v997
        %v1089 = vunpack.c.l.b16 %v998
        %v1090 = vunpack.c.h.b16 %v998
        %v1091 = vunpack.c.l.b16 %v999
        %v1092 = vunpack.c.h.b16 %v999
        %v1093 = vunpack.c.l.b16 %v1000
        %v1094 = vunpack.c.h.b16 %v1000
        %v1095 = vunpack.c.l.b16 %v1001
        %v1096 = vunpack.c.h.b16 %v1001
        %v1097 = vunpack.c.l.b16 %v1002
        %v1098 = vunpack.c.h.b16 %v1002
        %v1099 = vunpack.c.l.b16 %v1003
        %v1100 = vunpack.c.h.b16 %v1003
        %v1101 = vunpack.c.l.b16 %v1004
        %v1102 = vunpack.c.h.b16 %v1004
        %v1103 = vunpack.c.l.b16 %v1005
        %v1104 = vunpack.c.h.b16 %v1005
        %v1105 = vunpack.c.l.b16 %v1006
        %v1106 = vunpack.c.h.b16 %v1006
        %v1107 = vunpack.c.l.b16 %v1007
        %v1108 = vunpack.c.h.b16 %v1007
        %v1109 = vunpack.c.l.b16 %v1008
        %v1110 = vunpack.c.h.b16 %v1008
        %v1111 = vpack.c.b16 %v1049, %v1047
        %v1112 = vpack.c.b16 %v1050, %v1048
        %v1113 = vpack.c.b16 %v1053, %v1051
        %v1114 = vpack.c.b16 %v1054, %v1052
        %v1115 = vpack.c.b16 %v1057, %v1055
        %v1116 = vpack.c.b16 %v1058, %v1056
        %v1117 = vpack.c.b16 %v1061, %v1059
        %v1118 = vpack.c.b16 %v1062, %v1060
        %v1119 = vpack.c.b16 %v1065, %v1063
        %v1120 = vpack.c.b16 %v1066, %v1064
        %v1121 = vpack.c.b16 %v1069, %v1067
        %v1122 = vpack.c.b16 %v1070, %v1068
        %v1123 = vpack.c.b16 %v1073, %v1071
        %v1124 = vpack.c.b16 %v1074, %v1072
        %v1125 = vpack.c.b16 %v1077, %v1075
        %v1126 = vpack.c.b16 %v1078, %v1076
        %v1127 = vpack.c.b16 %v1081, %v1079
        %v1128 = vpack.c.b16 %v1082, %v1080
        %v1129 = vpack.c.b16 %v1085, %v1083
        %v1130 = vpack.c.b16 %v1086, %v1084
        %v1131 = vpack.c.b16 %v1089, %v1087
        %v1132 = vpack.c.b16 %v1090, %v1088
        %v1133 = vpack.c.b16 %v1093, %v1091
        %v1134 = vpack.c.b16 %v1094, %v1092
        %v1135 = vpack.c.b16 %v1097, %v1095
        %v1136 = vpack.c.b16 %v1098, %v1096
        %v1137 = vpack.c.b16 %v1101, %v1099
        %v1138 = vpack.c.b16 %v1102, %v1100
        %v1139 = vpack.c.b16 %v1105, %v1103
        %v1140 = vpack.c.b16 %v1106, %v1104
        %v1141 = vpack.c.b16 %v1109, %v1107
        %v1142 = vpack.c.b16 %v1110, %v1108
        %1175 = vmatpush.bf16.msra.mxu0 %v1125
        %1176 = vmatpush.bf16.msra.mxu0 %v1123
        %1177 = vmatpush.bf16.msra.mxu0 %v1121
        %1178 = vmatpush.bf16.msra.mxu0 %v1119
        %1179 = vmatpush.bf16.msra.mxu0 %v1117
        %1180 = vmatpush.bf16.msra.mxu0 %v1115
        %1181 = vmatpush.bf16.msra.mxu0 %v1113
        %1182 = vmatpush.bf16.msra.mxu0 %v1111
        %1183 = vmatmul.bf16.gmra.mxu0 %v969
        %v1184 = vpop.f32.mrf.mxu0
        %v1185 = vadd.f32 %v1011, %v1184
        %v1186 = vpop.f32.mrf.mxu0
        %v1187 = vadd.f32 %v1011, %v1186
        %1188 = vmatmul.bf16.gmra.mxu0 %v971
        %v1189 = vpop.f32.mrf.mxu0
        %v1190 = vadd.f32 %v1011, %v1189
        %v1191 = vpop.f32.mrf.mxu0
        %v1192 = vadd.f32 %v1011, %v1191
        %1193 = vmatmul.bf16.gmra.mxu0 %v973
        %v1194 = vpop.f32.mrf.mxu0
        %v1195 = vadd.f32 %v1011, %v1194
        %v1196 = vpop.f32.mrf.mxu0
        %v1197 = vadd.f32 %v1011, %v1196
        %1198 = vmatmul.bf16.gmra.mxu0 %v975
        %v1199 = vpop.f32.mrf.mxu0
        %v1200 = vadd.f32 %v1011, %v1199
        %v1201 = vpop.f32.mrf.mxu0
        %v1202 = vadd.f32 %v1011, %v1201
        %1203 = vdwg.mxu0
        %1204 = vmatpush.bf16.msra.mxu0 %v1141
        %1205 = vmatpush.bf16.msra.mxu0 %v1139
        %1206 = vmatpush.bf16.msra.mxu0 %v1137
        %1207 = vmatpush.bf16.msra.mxu0 %v1135
        %1208 = vmatpush.bf16.msra.mxu0 %v1133
        %1209 = vmatpush.bf16.msra.mxu0 %v1131
        %1210 = vmatpush.bf16.msra.mxu0 %v1129
        %1211 = vmatpush.bf16.msra.mxu0 %v1127
        %1212 = vmatmul.bf16.gmra.mxu0 %v970
        %v1213 = vpop.f32.mrf.mxu0
        %v1214 = vadd.f32 %v1185, %v1213
        %v1215 = vpop.f32.mrf.mxu0
        %v1216 = vadd.f32 %v1187, %v1215
        %1217 = vmatmul.bf16.gmra.mxu0 %v972
        %v1218 = vpop.f32.mrf.mxu0
        %v1219 = vadd.f32 %v1190, %v1218
        %v1220 = vpop.f32.mrf.mxu0
        %v1221 = vadd.f32 %v1192, %v1220
        %1222 = vmatmul.bf16.gmra.mxu0 %v974
        %v1223 = vpop.f32.mrf.mxu0
        %v1224 = vadd.f32 %v1195, %v1223
        %v1225 = vpop.f32.mrf.mxu0
        %v1226 = vadd.f32 %v1197, %v1225
        %1227 = vmatmul.bf16.gmra.mxu0 %v976
        %v1228 = vpop.f32.mrf.mxu0
        %v1229 = vadd.f32 %v1200, %v1228
        %v1230 = vpop.f32.mrf.mxu0
        %v1231 = vadd.f32 %v1202, %v1230
        %1232 = vdwg.mxu0
        %1233 = vmatpush.bf16.msra.mxu0 %v1126
        %1234 = vmatpush.bf16.msra.mxu0 %v1124
        %1235 = vmatpush.bf16.msra.mxu0 %v1122
        %1236 = vmatpush.bf16.msra.mxu0 %v1120
        %1237 = vmatpush.bf16.msra.mxu0 %v1118
        %1238 = vmatpush.bf16.msra.mxu0 %v1116
        %1239 = vmatpush.bf16.msra.mxu0 %v1114
        %1240 = vmatpush.bf16.msra.mxu0 %v1112
        %1241 = vmatmul.bf16.gmra.mxu0 %v969
        %v1242 = vpop.f32.mrf.mxu0
        %v1243 = vadd.f32 %v1012, %v1242
        %v1244 = vpop.f32.mrf.mxu0
        %v1245 = vadd.f32 %v1012, %v1244
        %1246 = vmatmul.bf16.gmra.mxu0 %v971
        %v1247 = vpop.f32.mrf.mxu0
        %v1248 = vadd.f32 %v1012, %v1247
        %v1249 = vpop.f32.mrf.mxu0
        %v1250 = vadd.f32 %v1012, %v1249
        %1251 = vmatmul.bf16.gmra.mxu0 %v973
        %v1252 = vpop.f32.mrf.mxu0
        %v1253 = vadd.f32 %v1012, %v1252
        %v1254 = vpop.f32.mrf.mxu0
        %v1255 = vadd.f32 %v1012, %v1254
        %1256 = vmatmul.bf16.gmra.mxu0 %v975
        %v1257 = vpop.f32.mrf.mxu0
        %v1258 = vadd.f32 %v1012, %v1257
        %v1259 = vpop.f32.mrf.mxu0
        %v1260 = vadd.f32 %v1012, %v1259
        %1261 = vdwg.mxu0
        %1262 = vmatpush.bf16.msra.mxu0 %v1142
        %1263 = vmatpush.bf16.msra.mxu0 %v1140
        %1264 = vmatpush.bf16.msra.mxu0 %v1138
        %1265 = vmatpush.bf16.msra.mxu0 %v1136
        %1266 = vmatpush.bf16.msra.mxu0 %v1134
        %1267 = vmatpush.bf16.msra.mxu0 %v1132
        %1268 = vmatpush.bf16.msra.mxu0 %v1130
        %1269 = vmatpush.bf16.msra.mxu0 %v1128
        %1270 = vmatmul.bf16.gmra.mxu0 %v970
        %v1271 = vpop.f32.mrf.mxu0
        %v1272 = vadd.f32 %v1243, %v1271
        %v1273 = vpop.f32.mrf.mxu0
        %v1274 = vadd.f32 %v1245, %v1273
        %1275 = vmatmul.bf16.gmra.mxu0 %v972
        %v1276 = vpop.f32.mrf.mxu0
        %v1277 = vadd.f32 %v1248, %v1276
        %v1278 = vpop.f32.mrf.mxu0
        %v1279 = vadd.f32 %v1250, %v1278
        %1280 = vmatmul.bf16.gmra.mxu0 %v974
        %v1281 = vpop.f32.mrf.mxu0
        %v1282 = vadd.f32 %v1253, %v1281
        %v1283 = vpop.f32.mrf.mxu0
        %v1284 = vadd.f32 %v1255, %v1283
        %1285 = vmatmul.bf16.gmra.mxu0 %v976
        %v1286 = vpop.f32.mrf.mxu0
        %v1287 = vadd.f32 %v1258, %v1286
        %v1288 = vpop.f32.mrf.mxu0
        %v1289 = vadd.f32 %v1260, %v1288
        %1290 = vdwg.mxu0
        %v1291 = vmax.f32 %v1214, 0.0
        %v1292 = vmax.f32 %v1272, 0.0
        %v1293 = vmax.f32 %v1216, 0.0
        %v1294 = vmax.f32 %v1274, 0.0
        %v1295 = vmax.f32 %v1219, 0.0
        %v1296 = vmax.f32 %v1277, 0.0
        %v1297 = vmax.f32 %v1221, 0.0
        %v1298 = vmax.f32 %v1279, 0.0
        %v1299 = vmax.f32 %v1224, 0.0
        %v1300 = vmax.f32 %v1282, 0.0
        %v1301 = vmax.f32 %v1226, 0.0
        %v1302 = vmax.f32 %v1284, 0.0
        %v1303 = vmax.f32 %v1229, 0.0
        %v1304 = vmax.f32 %v1287, 0.0
        %v1305 = vmax.f32 %v1231, 0.0
        %v1306 = vmax.f32 %v1289, 0.0
        %v1307 = vpack.c.bf16 %v1293, %v1291
        %v1308 = vpack.c.bf16 %v1294, %v1292
        %v1309 = vpack.c.bf16 %v1297, %v1295
        %v1310 = vpack.c.bf16 %v1298, %v1296
        %v1311 = vpack.c.bf16 %v1301, %v1299
        %v1312 = vpack.c.bf16 %v1302, %v1300
        %v1313 = vpack.c.bf16 %v1305, %v1303
        %v1314 = vpack.c.bf16 %v1306, %v1304
        %v1315 = vld [vmem:[#allocation10] sm:$0xf]
        %v1316 = vld [vmem:[#allocation10 + $0x4] sm:$0xf]
        %v1317 = vld [vmem:[#allocation10 + $0x8] sm:$0xf]
        %v1318 = vld [vmem:[#allocation10 + $0xc] sm:$0xf]
        %v1319 = vld [vmem:[#allocation10 + $0x10] sm:$0xf]
        %v1320 = vld [vmem:[#allocation10 + $0x14] sm:$0xf]
        %v1321 = vld [vmem:[#allocation10 + $0x18] sm:$0xf]
        %v1322 = vld [vmem:[#allocation10 + $0x1c] sm:$0xf]
        %v1323 = vld [vmem:[#allocation10 + $0x20] sm:$0xf]
        %v1324 = vld [vmem:[#allocation10 + $0x24] sm:$0xf]
        %v1325 = vld [vmem:[#allocation10 + $0x28] sm:$0xf]
        %v1326 = vld [vmem:[#allocation10 + $0x2c] sm:$0xf]
        %v1327 = vld [vmem:[#allocation10 + $0x30] sm:$0xf]
        %v1328 = vld [vmem:[#allocation10 + $0x34] sm:$0xf]
        %v1329 = vld [vmem:[#allocation10 + $0x38] sm:$0xf]
        %v1330 = vld [vmem:[#allocation10 + $0x3c] sm:$0xf]
        %v1331 = vld [vmem:[#allocation10 + $0x40] sm:$0xf]
        %v1332 = vld [vmem:[#allocation10 + $0x44] sm:$0xf]
        %v1333 = vld [vmem:[#allocation10 + $0x48] sm:$0xf]
        %v1334 = vld [vmem:[#allocation10 + $0x4c] sm:$0xf]
        %v1335 = vld [vmem:[#allocation10 + $0x50] sm:$0xf]
        %v1336 = vld [vmem:[#allocation10 + $0x54] sm:$0xf]
        %v1337 = vld [vmem:[#allocation10 + $0x58] sm:$0xf]
        %v1338 = vld [vmem:[#allocation10 + $0x5c] sm:$0xf]
        %v1339 = vld [vmem:[#allocation10 + $0x60] sm:$0xf]
        %v1340 = vld [vmem:[#allocation10 + $0x64] sm:$0xf]
        %v1341 = vld [vmem:[#allocation10 + $0x68] sm:$0xf]
        %v1342 = vld [vmem:[#allocation10 + $0x6c] sm:$0xf]
        %v1343 = vld [vmem:[#allocation10 + $0x70] sm:$0xf]
        %v1344 = vld [vmem:[#allocation10 + $0x74] sm:$0xf]
        %v1345 = vld [vmem:[#allocation10 + $0x78] sm:$0xf]
        %v1346 = vld [vmem:[#allocation10 + $0x7c] sm:$0xf]
        %v1347 = vld [vmem:[#allocation11] sm:$0x1]
        %v1349 = vperm.slane %v1347, 0
        %v1383 = vunpack.c.l.b16 %v1315
        %v1384 = vunpack.c.l.b16 %v1316
        %v1385 = vunpack.c.l.b16 %v1317
        %v1386 = vunpack.c.l.b16 %v1318
        %v1387 = vunpack.c.l.b16 %v1319
        %v1388 = vunpack.c.l.b16 %v1320
        %v1389 = vunpack.c.l.b16 %v1321
        %v1390 = vunpack.c.l.b16 %v1322
        %v1391 = vunpack.c.l.b16 %v1323
        %v1392 = vunpack.c.l.b16 %v1324
        %v1393 = vunpack.c.l.b16 %v1325
        %v1394 = vunpack.c.l.b16 %v1326
        %v1395 = vunpack.c.l.b16 %v1327
        %v1396 = vunpack.c.l.b16 %v1328
        %v1397 = vunpack.c.l.b16 %v1329
        %v1398 = vunpack.c.l.b16 %v1330
        %v1399 = vunpack.c.l.b16 %v1331
        %v1400 = vunpack.c.l.b16 %v1332
        %v1401 = vunpack.c.l.b16 %v1333
        %v1402 = vunpack.c.l.b16 %v1334
        %v1403 = vunpack.c.l.b16 %v1335
        %v1404 = vunpack.c.l.b16 %v1336
        %v1405 = vunpack.c.l.b16 %v1337
        %v1406 = vunpack.c.l.b16 %v1338
        %v1407 = vunpack.c.l.b16 %v1339
        %v1408 = vunpack.c.l.b16 %v1340
        %v1409 = vunpack.c.l.b16 %v1341
        %v1410 = vunpack.c.l.b16 %v1342
        %v1411 = vunpack.c.l.b16 %v1343
        %v1412 = vunpack.c.l.b16 %v1344
        %v1413 = vunpack.c.l.b16 %v1345
        %v1414 = vunpack.c.l.b16 %v1346
        %v1415 = vpack.c.b16 %v1384, %v1383
        %v1416 = vpack.c.b16 %v1386, %v1385
        %v1417 = vpack.c.b16 %v1388, %v1387
        %v1418 = vpack.c.b16 %v1390, %v1389
        %v1419 = vpack.c.b16 %v1392, %v1391
        %v1420 = vpack.c.b16 %v1394, %v1393
        %v1421 = vpack.c.b16 %v1396, %v1395
        %v1422 = vpack.c.b16 %v1398, %v1397
        %v1423 = vpack.c.b16 %v1400, %v1399
        %v1424 = vpack.c.b16 %v1402, %v1401
        %v1425 = vpack.c.b16 %v1404, %v1403
        %v1426 = vpack.c.b16 %v1406, %v1405
        %v1427 = vpack.c.b16 %v1408, %v1407
        %v1428 = vpack.c.b16 %v1410, %v1409
        %v1429 = vpack.c.b16 %v1412, %v1411
        %v1430 = vpack.c.b16 %v1414, %v1413
        %1447 = vmatpush.bf16.msra.mxu0 %v1422
        %1448 = vmatpush.bf16.msra.mxu0 %v1421
        %1449 = vmatpush.bf16.msra.mxu0 %v1420
        %1450 = vmatpush.bf16.msra.mxu0 %v1419
        %1451 = vmatpush.bf16.msra.mxu0 %v1418
        %1452 = vmatpush.bf16.msra.mxu0 %v1417
        %1453 = vmatpush.bf16.msra.mxu0 %v1416
        %1454 = vmatpush.bf16.msra.mxu0 %v1415
        %1455 = vmatmul.bf16.gmra.mxu0 %v1307
        %v1456 = vpop.f32.mrf.mxu0
        %v1457 = vadd.f32 %v1349, %v1456
        %v1458 = vpop.f32.mrf.mxu0
        %v1459 = vadd.f32 %v1349, %v1458
        %1460 = vmatmul.bf16.gmra.mxu0 %v1309
        %v1461 = vpop.f32.mrf.mxu0
        %v1462 = vadd.f32 %v1349, %v1461
        %v1463 = vpop.f32.mrf.mxu0
        %v1464 = vadd.f32 %v1349, %v1463
        %1465 = vmatmul.bf16.gmra.mxu0 %v1311
        %v1466 = vpop.f32.mrf.mxu0
        %v1467 = vadd.f32 %v1349, %v1466
        %v1468 = vpop.f32.mrf.mxu0
        %v1469 = vadd.f32 %v1349, %v1468
        %1470 = vmatmul.bf16.gmra.mxu0 %v1313
        %v1471 = vpop.f32.mrf.mxu0
        %v1472 = vadd.f32 %v1349, %v1471
        %v1473 = vpop.f32.mrf.mxu0
        %v1474 = vadd.f32 %v1349, %v1473
        %1475 = vdwg.mxu0
        %1476 = vmatpush.bf16.msra.mxu0 %v1430
        %1477 = vmatpush.bf16.msra.mxu0 %v1429
        %1478 = vmatpush.bf16.msra.mxu0 %v1428
        %1479 = vmatpush.bf16.msra.mxu0 %v1427
        %1480 = vmatpush.bf16.msra.mxu0 %v1426
        %1481 = vmatpush.bf16.msra.mxu0 %v1425
        %1482 = vmatpush.bf16.msra.mxu0 %v1424
        %1483 = vmatpush.bf16.msra.mxu0 %v1423
        %1484 = vmatmul.bf16.gmra.mxu0 %v1308
        %v1485 = vpop.f32.mrf.mxu0
        %v1486 = vadd.f32 %v1457, %v1485
        %v1487 = vpop.f32.mrf.mxu0
        %v1488 = vadd.f32 %v1459, %v1487
        %1489 = vmatmul.bf16.gmra.mxu0 %v1310
        %v1490 = vpop.f32.mrf.mxu0
        %v1491 = vadd.f32 %v1462, %v1490
        %v1492 = vpop.f32.mrf.mxu0
        %v1493 = vadd.f32 %v1464, %v1492
        %1494 = vmatmul.bf16.gmra.mxu0 %v1312
        %v1495 = vpop.f32.mrf.mxu0
        %v1496 = vadd.f32 %v1467, %v1495
        %v1497 = vpop.f32.mrf.mxu0
        %v1498 = vadd.f32 %v1469, %v1497
        %1499 = vmatmul.bf16.gmra.mxu0 %v1314
        %v1500 = vpop.f32.mrf.mxu0
        %v1501 = vadd.f32 %v1472, %v1500
        %v1502 = vpop.f32.mrf.mxu0
        %v1503 = vadd.f32 %v1474, %v1502
        %1504 = vdwg.mxu0
        %vm1505 = vcmask 31744
        %v1506 = vsel %vm1505, %v1486, -inf
        %1507 = vmax.xlane.f32.xlu0 %v1506
        %v1508 = vpop.xlane.xlu0 %1507
        %v1509 = vsel %vm1505, %v1488, -inf
        %1510 = vmax.xlane.f32.xlu0 %v1509
        %v1511 = vpop.xlane.xlu0 %1510
        %v1512 = vsel %vm1505, %v1491, -inf
        %1513 = vmax.xlane.f32.xlu0 %v1512
        %v1514 = vpop.xlane.xlu0 %1513
        %v1515 = vsel %vm1505, %v1493, -inf
        %1516 = vmax.xlane.f32.xlu0 %v1515
        %v1517 = vpop.xlane.xlu0 %1516
        %v1518 = vsel %vm1505, %v1496, -inf
        %1519 = vmax.xlane.f32.xlu0 %v1518
        %v1520 = vpop.xlane.xlu0 %1519
        %v1521 = vsel %vm1505, %v1498, -inf
        %1522 = vmax.xlane.f32.xlu0 %v1521
        %v1523 = vpop.xlane.xlu0 %1522
        %v1524 = vsel %vm1505, %v1501, -inf
        %1525 = vmax.xlane.f32.xlu0 %v1524
        %v1526 = vpop.xlane.xlu0 %1525
        %v1527 = vsel %vm1505, %v1503, -inf
        %1528 = vmax.xlane.f32.xlu0 %v1527
        %v1529 = vpop.xlane.xlu0 %1528
        %v1530 = vsub.f32 %v1486, %v1508
        %v1531 = vsub.f32 %v1488, %v1511
        %v1532 = vsub.f32 %v1491, %v1514
        %v1533 = vsub.f32 %v1493, %v1517
        %v1534 = vsub.f32 %v1496, %v1520
        %v1535 = vsub.f32 %v1498, %v1523
        %v1536 = vsub.f32 %v1501, %v1526
        %v1537 = vsub.f32 %v1503, %v1529
        %v1538 = vmul.f32 %v1530, 1.442695
        %v1539 = vpow.pop %v1538
        %v1540 = vmul.f32 %v1531, 1.442695
        %v1541 = vpow.pop %v1540
        %v1542 = vmul.f32 %v1532, 1.442695
        %v1543 = vpow.pop %v1542
        %v1544 = vmul.f32 %v1533, 1.442695
        %v1545 = vpow.pop %v1544
        %v1546 = vmul.f32 %v1534, 1.442695
        %v1547 = vpow.pop %v1546
        %v1548 = vmul.f32 %v1535, 1.442695
        %v1549 = vpow.pop %v1548
        %v1550 = vmul.f32 %v1536, 1.442695
        %v1551 = vpow.pop %v1550
        %v1552 = vmul.f32 %v1537, 1.442695
        %v1553 = vpow.pop %v1552
        %v1554 = vsel %vm1505, %v1539, 0.0
        %1555 = vadd.xlane.f32.xlu0 %v1554
        %v1556 = vpop.xlane.xlu0 %1555
        %v1557 = vsel %vm1505, %v1541, 0.0
        %1558 = vadd.xlane.f32.xlu0 %v1557
        %v1559 = vpop.xlane.xlu0 %1558
        %v1560 = vsel %vm1505, %v1543, 0.0
        %1561 = vadd.xlane.f32.xlu0 %v1560
        %v1562 = vpop.xlane.xlu0 %1561
        %v1563 = vsel %vm1505, %v1545, 0.0
        %1564 = vadd.xlane.f32.xlu0 %v1563
        %v1565 = vpop.xlane.xlu0 %1564
        %v1566 = vsel %vm1505, %v1547, 0.0
        %1567 = vadd.xlane.f32.xlu0 %v1566
        %v1568 = vpop.xlane.xlu0 %1567
        %v1569 = vsel %vm1505, %v1549, 0.0
        %1570 = vadd.xlane.f32.xlu0 %v1569
        %v1571 = vpop.xlane.xlu0 %1570
        %v1572 = vsel %vm1505, %v1551, 0.0
        %1573 = vadd.xlane.f32.xlu0 %v1572
        %v1574 = vpop.xlane.xlu0 %1573
        %v1575 = vsel %vm1505, %v1553, 0.0
        %1576 = vadd.xlane.f32.xlu0 %v1575
        %v1577 = vpop.xlane.xlu0 %1576
        %v1578 = vrcp.pop %v1556
        %v1579 = vrcp.pop %v1559
        %v1580 = vrcp.pop %v1562
        %v1581 = vrcp.pop %v1565
        %v1582 = vrcp.pop %v1568
        %v1583 = vrcp.pop %v1571
        %v1584 = vrcp.pop %v1574
        %v1585 = vrcp.pop %v1577
        %v1586 = vmul.f32 %v1539, %v1578
        %v1587 = vmul.f32 %v1541, %v1579
        %v1588 = vmul.f32 %v1543, %v1580
        %v1589 = vmul.f32 %v1545, %v1581
        %v1590 = vmul.f32 %v1547, %v1582
        %v1591 = vmul.f32 %v1549, %v1583
        %v1592 = vmul.f32 %v1551, %v1584
        %v1593 = vmul.f32 %v1553, %v1585
        %v1594 = vld [vmem:[%s7] sm:$0xf]
        %v1596 = vsel %vm1505, %v1586, 0
        %v1599 = vsel %vm1505, %v1587, 0
        %v1602 = vsel %vm1505, %v1588, 0
        %v1605 = vsel %vm1505, %v1589, 0
        %v1608 = vsel %vm1505, %v1590, 0
        %v1611 = vsel %vm1505, %v1591, 0
        %v1614 = vsel %vm1505, %v1592, 0
        %v1617 = vsel %vm1505, %v1593, 0
        %vm1619 = vcmask 1043456
        %v1621 = vsel %vm1619, %v1594, 0
        %1623 = vmatpush.msra.mxu0 0.0
        %1624 = vmatpush.msra.mxu0 0.0
        %1625 = vmatpush.msra.mxu0 0.0
        %1626 = vmatpush.msra.mxu0 0.0
        %1627 = vmatpush.msra.mxu0 0.0
        %1628 = vmatpush.msra.mxu0 0.0
        %1629 = vmatpush.msra.mxu0 0.0
        %1630 = vmatpush.msra.mxu0 0.0
        %1631 = vmatpush.msra.mxu0 0.0
        %1632 = vmatpush.msra.mxu0 0.0
        %1633 = vmatpush.msra.mxu0 0.0
        %1634 = vmatpush.msra.mxu0 0.0
        %1635 = vmatpush.msra.mxu0 0.0
        %1636 = vmatpush.msra.mxu0 0.0
        %1637 = vmatpush.msra.mxu0 0.0
        %1638 = vmatpush.msra.mxu0 %v1621
        %1639 = vmatmul.f32.gmra.mxu0 %v1596
        %v1640 = vpop.f32.mrf.mxu0
        %v1641 = vadd.f32 0.0, %v1640
        %1642 = vmatmul.f32.gmra.mxu0 %v1599
        %v1643 = vpop.f32.mrf.mxu0
        %v1644 = vadd.f32 0.0, %v1643
        %1645 = vmatmul.f32.gmra.mxu0 %v1602
        %v1646 = vpop.f32.mrf.mxu0
        %v1647 = vadd.f32 0.0, %v1646
        %1648 = vmatmul.f32.gmra.mxu0 %v1605
        %v1649 = vpop.f32.mrf.mxu0
        %v1650 = vadd.f32 0.0, %v1649
        %1651 = vmatmul.f32.gmra.mxu0 %v1608
        %v1652 = vpop.f32.mrf.mxu0
        %v1653 = vadd.f32 0.0, %v1652
        %1654 = vmatmul.f32.gmra.mxu0 %v1611
        %v1655 = vpop.f32.mrf.mxu0
        %v1656 = vadd.f32 0.0, %v1655
        %1657 = vmatmul.f32.gmra.mxu0 %v1614
        %v1658 = vpop.f32.mrf.mxu0
        %v1659 = vadd.f32 0.0, %v1658
        %1660 = vmatmul.f32.gmra.mxu0 %v1617
        %v1661 = vpop.f32.mrf.mxu0
        %v1662 = vadd.f32 0.0, %v1661
        %1663 = vdwg.mxu0
        %v1664 = vadd.f32 %v1486, %v1641
        %v1665 = vadd.f32 %v1488, %v1644
        %v1666 = vadd.f32 %v1491, %v1647
        %v1667 = vadd.f32 %v1493, %v1650
        %v1668 = vadd.f32 %v1496, %v1653
        %v1669 = vadd.f32 %v1498, %v1656
        %v1670 = vadd.f32 %v1501, %v1659
        %v1671 = vadd.f32 %v1503, %v1662
        %vm1672 = vcmask 97312
        %v1673 = vsel %vm1672, %v1664, -inf
        %1674 = vmax.xlane.f32.xlu0 %v1673
        %v1675 = vpop.xlane.xlu0 %1674
        %v1676 = vsel %vm1672, %v1665, -inf
        %1677 = vmax.xlane.f32.xlu0 %v1676
        %v1678 = vpop.xlane.xlu0 %1677
        %v1679 = vsel %vm1672, %v1666, -inf
        %1680 = vmax.xlane.f32.xlu0 %v1679
        %v1681 = vpop.xlane.xlu0 %1680
        %v1682 = vsel %vm1672, %v1667, -inf
        %1683 = vmax.xlane.f32.xlu0 %v1682
        %v1684 = vpop.xlane.xlu0 %1683
        %v1685 = vsel %vm1672, %v1668, -inf
        %1686 = vmax.xlane.f32.xlu0 %v1685
        %v1687 = vpop.xlane.xlu0 %1686
        %v1688 = vsel %vm1672, %v1669, -inf
        %1689 = vmax.xlane.f32.xlu0 %v1688
        %v1690 = vpop.xlane.xlu0 %1689
        %v1691 = vsel %vm1672, %v1670, -inf
        %1692 = vmax.xlane.f32.xlu0 %v1691
        %v1693 = vpop.xlane.xlu0 %1692
        %v1694 = vsel %vm1672, %v1671, -inf
        %1695 = vmax.xlane.f32.xlu0 %v1694
        %v1696 = vpop.xlane.xlu0 %1695
        %v1697 = vsub.f32 %v1664, %v1675
        %v1698 = vsub.f32 %v1665, %v1678
        %v1699 = vsub.f32 %v1666, %v1681
        %v1700 = vsub.f32 %v1667, %v1684
        %v1701 = vsub.f32 %v1668, %v1687
        %v1702 = vsub.f32 %v1669, %v1690
        %v1703 = vsub.f32 %v1670, %v1693
        %v1704 = vsub.f32 %v1671, %v1696
        %v1705 = vmul.f32 %v1697, 1.442695
        %v1706 = vpow.pop %v1705
        %v1707 = vmul.f32 %v1698, 1.442695
        %v1708 = vpow.pop %v1707
        %v1709 = vmul.f32 %v1699, 1.442695
        %v1710 = vpow.pop %v1709
        %v1711 = vmul.f32 %v1700, 1.442695
        %v1712 = vpow.pop %v1711
        %v1713 = vmul.f32 %v1701, 1.442695
        %v1714 = vpow.pop %v1713
        %v1715 = vmul.f32 %v1702, 1.442695
        %v1716 = vpow.pop %v1715
        %v1717 = vmul.f32 %v1703, 1.442695
        %v1718 = vpow.pop %v1717
        %v1719 = vmul.f32 %v1704, 1.442695
        %v1720 = vpow.pop %v1719
        %1729 = vrot.lane.b32.xlu0 %v1706, 124
        %v1730 = vpop.permute.xlu0 %1729
        %1731 = vrot.lane.b32.xlu0 %v1708, 124
        %v1732 = vpop.permute.xlu0 %1731
        %1733 = vrot.lane.b32.xlu0 %v1710, 124
        %v1734 = vpop.permute.xlu0 %1733
        %1735 = vrot.lane.b32.xlu0 %v1712, 124
        %v1736 = vpop.permute.xlu0 %1735
        %1737 = vrot.lane.b32.xlu0 %v1714, 124
        %v1738 = vpop.permute.xlu0 %1737
        %1739 = vrot.lane.b32.xlu0 %v1716, 124
        %v1740 = vpop.permute.xlu0 %1739
        %1741 = vrot.lane.b32.xlu0 %v1718, 124
        %v1742 = vpop.permute.xlu0 %1741
        %1743 = vrot.lane.b32.xlu0 %v1720, 124
        %v1744 = vpop.permute.xlu0 %1743
        %vm1753 = vcmask 64512
        %v1754 = vsel %vm1753, %v1730, 0.0
        %1755 = vadd.xlane.f32.xlu0 %v1754
        %v1756 = vpop.xlane.xlu0 %1755
        %v1757 = vsel %vm1753, %v1732, 0.0
        %1758 = vadd.xlane.f32.xlu0 %v1757
        %v1759 = vpop.xlane.xlu0 %1758
        %v1760 = vsel %vm1753, %v1734, 0.0
        %1761 = vadd.xlane.f32.xlu0 %v1760
        %v1762 = vpop.xlane.xlu0 %1761
        %v1763 = vsel %vm1753, %v1736, 0.0
        %1764 = vadd.xlane.f32.xlu0 %v1763
        %v1765 = vpop.xlane.xlu0 %1764
        %v1766 = vsel %vm1753, %v1738, 0.0
        %1767 = vadd.xlane.f32.xlu0 %v1766
        %v1768 = vpop.xlane.xlu0 %1767
        %v1769 = vsel %vm1753, %v1740, 0.0
        %1770 = vadd.xlane.f32.xlu0 %v1769
        %v1771 = vpop.xlane.xlu0 %1770
        %v1772 = vsel %vm1753, %v1742, 0.0
        %1773 = vadd.xlane.f32.xlu0 %v1772
        %v1774 = vpop.xlane.xlu0 %1773
        %v1775 = vsel %vm1753, %v1744, 0.0
        %1776 = vadd.xlane.f32.xlu0 %v1775
        %v1777 = vpop.xlane.xlu0 %1776
        %v1778 = vrcp.pop %v1756
        %v1779 = vrcp.pop %v1759
        %v1780 = vrcp.pop %v1762
        %v1781 = vrcp.pop %v1765
        %v1782 = vrcp.pop %v1768
        %v1783 = vrcp.pop %v1771
        %v1784 = vrcp.pop %v1774
        %v1785 = vrcp.pop %v1777
        %v1786 = vmul.f32 %v1706, %v1778
        %v1787 = vmul.f32 %v1708, %v1779
        %v1788 = vmul.f32 %v1710, %v1780
        %v1789 = vmul.f32 %v1712, %v1781
        %v1790 = vmul.f32 %v1714, %v1782
        %v1791 = vmul.f32 %v1716, %v1783
        %v1792 = vmul.f32 %v1718, %v1784
        %v1793 = vmul.f32 %v1720, %v1785
        %v1794 = vld [vmem:[#allocation13] sm:$0xff]
        %1803 = vrot.lane.b32.xlu0 %v1786, 124
        %v1804 = vpop.permute.xlu0 %1803
        %1805 = vrot.lane.b32.xlu0 %v1787, 124
        %v1806 = vpop.permute.xlu0 %1805
        %1807 = vrot.lane.b32.xlu0 %v1788, 124
        %v1808 = vpop.permute.xlu0 %1807
        %1809 = vrot.lane.b32.xlu0 %v1789, 124
        %v1810 = vpop.permute.xlu0 %1809
        %1811 = vrot.lane.b32.xlu0 %v1790, 124
        %v1812 = vpop.permute.xlu0 %1811
        %1813 = vrot.lane.b32.xlu0 %v1791, 124
        %v1814 = vpop.permute.xlu0 %1813
        %1815 = vrot.lane.b32.xlu0 %v1792, 124
        %v1816 = vpop.permute.xlu0 %1815
        %1817 = vrot.lane.b32.xlu0 %v1793, 124
        %v1818 = vpop.permute.xlu0 %1817
        %v1819 = vsel %vm1753, %v1804, 0
        %v1821 = vsel %vm1753, %v1806, 0
        %v1823 = vsel %vm1753, %v1808, 0
        %v1825 = vsel %vm1753, %v1810, 0
        %v1827 = vsel %vm1753, %v1812, 0
        %v1829 = vsel %vm1753, %v1814, 0
        %v1831 = vsel %vm1753, %v1816, 0
        %v1833 = vsel %vm1753, %v1818, 0
        %1835 = vmatpush.msra.mxu0 0.0
        %1836 = vmatpush.msra.mxu0 0.0
        %1837 = vmatpush.msra.mxu0 0.0
        %1838 = vmatpush.msra.mxu0 0.0
        %1839 = vmatpush.msra.mxu0 0.0
        %1840 = vmatpush.msra.mxu0 0.0
        %1841 = vmatpush.msra.mxu0 0.0
        %1842 = vmatpush.msra.mxu0 0.0
        %1843 = vmatpush.msra.mxu0 0.0
        %1844 = vmatpush.msra.mxu0 0.0
        %1845 = vmatpush.msra.mxu0 0.0
        %1846 = vmatpush.msra.mxu0 0.0
        %1847 = vmatpush.msra.mxu0 0.0
        %1848 = vmatpush.msra.mxu0 0.0
        %1849 = vmatpush.msra.mxu0 0.0
        %1850 = vmatpush.msra.mxu0 %v1794
        %1851 = vmatmul.f32.gmra.mxu0 %v1819
        %v1852 = vpop.f32.mrf.mxu0
        %v1853 = vadd.f32 0.0, %v1852
        %1854 = vmatmul.f32.gmra.mxu0 %v1821
        %v1855 = vpop.f32.mrf.mxu0
        %v1856 = vadd.f32 0.0, %v1855
        %1857 = vmatmul.f32.gmra.mxu0 %v1823
        %v1858 = vpop.f32.mrf.mxu0
        %v1859 = vadd.f32 0.0, %v1858
        %1860 = vmatmul.f32.gmra.mxu0 %v1825
        %v1861 = vpop.f32.mrf.mxu0
        %v1862 = vadd.f32 0.0, %v1861
        %1863 = vmatmul.f32.gmra.mxu0 %v1827
        %v1864 = vpop.f32.mrf.mxu0
        %v1865 = vadd.f32 0.0, %v1864
        %1866 = vmatmul.f32.gmra.mxu0 %v1829
        %v1867 = vpop.f32.mrf.mxu0
        %v1868 = vadd.f32 0.0, %v1867
        %1869 = vmatmul.f32.gmra.mxu0 %v1831
        %v1870 = vpop.f32.mrf.mxu0
        %v1871 = vadd.f32 0.0, %v1870
        %1872 = vmatmul.f32.gmra.mxu0 %v1833
        %v1873 = vpop.f32.mrf.mxu0
        %v1874 = vadd.f32 0.0, %v1873
        %1875 = vdwg.mxu0
        %v1876 = vadd.f32 %v1664, %v1853
        %v1877 = vadd.f32 %v1665, %v1856
        %v1878 = vadd.f32 %v1666, %v1859
        %v1879 = vadd.f32 %v1667, %v1862
        %v1880 = vadd.f32 %v1668, %v1865
        %v1881 = vadd.f32 %v1669, %v1868
        %v1882 = vadd.f32 %v1670, %v1871
        %v1883 = vadd.f32 %v1671, %v1874
        %1884 = vst [vmem:[%s446] sm:$0xff] %v1876
        %1885 = vst [vmem:[%s446 + $0x8] sm:$0xff] %v1877
        %1886 = vst [vmem:[%s446 + $0x10] sm:$0xff] %v1878
        %1887 = vst [vmem:[%s446 + $0x18] sm:$0xff] %v1879
        %1888 = vst [vmem:[%s446 + $0x20] sm:$0xff] %v1880
        %1889 = vst [vmem:[%s446 + $0x28] sm:$0xff] %v1881
        %1890 = vst [vmem:[%s446 + $0x30] sm:$0xff] %v1882
        %1891 = vst [vmem:[%s446 + $0x38] sm:$0xff] %v1883
        %s1892 = sand.u32 %s231, 1
        %s1893 = scalar_lea.sflag [#allocation4], %s1892
        %s1894 = sand.u32 %s231, 1
        %s1895 = smul.addr %s1894, 64
        %s1896 = scalar_lea.vmem [#allocation14], %s1895
        // Predicated region
        $region85: #{tpu_custom_call.1} parent=55 // pred_check
          %p1897 = pneg %p241
        $region86: #{tpu_custom_call.1} parent=55 // pred_check_branch
          %1899 = sbr.rel (%p1897) target = $region88
        $region87: #{tpu_custom_call.1} parent=55 // pred_region
          %s1900 = smul.u32 8, %s29
          %1902 = vsyncadd %s1893, 0
          %s1903 = smul.addr %s1900, 8
          %s1904 = scalar_lea.hbm %s9, %s1903
          %s1905 = sshll.u32 %s1896, 4
          %s1906 = int_to_ptr.vmem [resolvable:$true] %s1905
          %s1907 = sshll.u32 %s1904, 4
          %s1908 = int_to_ptr.hbm [resolvable:$true] %s1907
          %1913 = dma.vmem_to_hbm [thread:$0]  %s1906, 1024, %s1908, %s1893, 128, 128, 8
        $region88: #{tpu_custom_call.1} parent=55 // pred_fallthru
          _
      $region56: #{tpu_custom_call.1} parent=5 // pred_fallthru
        _
      %p1914 = scmp.le.s32.totalorder 2, %s24
      // Predicated region
      $region89: #{tpu_custom_call.1} parent=5 // pred_check
        %p1915 = pneg %p1914
      $region90: #{tpu_custom_call.1} parent=5 // pred_check_branch
        %1917 = sbr.rel (%p1915) target = $region92
      $region91: #{tpu_custom_call.1} parent=5 // pred_region
        %s1918 = ssub.s32 %s24, 2
        // Predicated region
        $region93: #{tpu_custom_call.1} parent=91 // pred_check
          %p1919 = pneg %p247
        $region94: #{tpu_custom_call.1} parent=91 // pred_check_branch
          %1921 = sbr.rel (%p1919) target = $region96
        $region95: #{tpu_custom_call.1} parent=91 // pred_region
          %s1922 = sand.u32 %s232, 1
          %s1923 = scalar_lea.sflag [#allocation4], %s1922
          %s1924 = sand.u32 %s232, 1
          %s1925 = smul.addr %s1924, 64
          %s1926 = scalar_lea.vmem [#allocation14], %s1925
          %1928 = dma.done %s1923, 1024
        $region96: #{tpu_custom_call.1} parent=91 // pred_fallthru
          _
      $region92: #{tpu_custom_call.1} parent=5 // pred_fallthru
        _
    $region6: #{tpu_custom_call.1} parent=1 // loop_footer
      %s28 = sadd.s32 1, %s24
    $region7: #{tpu_custom_call.1} parent=1 // loop_footer_branch
      %23 = sbr.rel target = $region3
    $region8: #{tpu_custom_call.1} parent=1 // loop_exit
      _
    %1929 = vsyncpa [#allocation3], 1
    %s1930 = scalar_lea.sflag [#allocation3], 1
    %1931 = vsyncpa %s1930, 1
    %1932 = vsyncpa [#allocation6], 1
    %1933 = vsyncpa [#allocation9], 1
    %1934 = vsyncpa [#allocation12], 1
    %1935 = vsyncpa [#allocation4], 1
    %s1936 = scalar_lea.sflag [#allocation4], 1
    %1937 = vsyncpa %s1936, 1

</llo_original>
